<compile_context>
chip_gen: v7x
topology: tpu7x:2x2x1
jax: 0.10.0
libtpu: 0.0.40
codegen_flags: <defaults>
</compile_context>

<pallas_src>
import functools
import numpy as np

import jax
import jax.numpy as jnp
from jax.experimental import pallas as pl
from jax.experimental.pallas import tpu as pltpu

# ---------------- hyperparameters (scaled-down, consistent with the module) ----------------
N_SYMBOLS = 10                 # len(symbols)
UNK_CLS = 8                    # unk_cls
UNK_INDEX = N_SYMBOLS          # _symbol_to_id['@unk'] in the (len(symbols)+1) vocab
ENC_HIDDEN = 32                # hp.encoder_hidden
ENC_HEAD = 2                   # hp.encoder_head
ENC_LAYERS = 2
FFT_FILTER = 64
FFT_KERNEL = (9, 1)
DEC_HIDDEN = 32                # hp.decoder_hidden
DEC_HEAD = 2
DEC_LAYERS = 2
N_MELS = 16                    # hp.n_mels
SPKER_DIM = 32                 # spker_embed_dim (== encoder hidden for SpeakerIntegrator)
VP_FILTER = 32
VP_KERNEL = 3
N_BINS = 8
POSTNET_DIM = 32
POSTNET_KERNEL = 5
POSTNET_LAYERS = 3
MAX_POS = 64

_CONV_BASE = 8  # sublane-aligned offset of the activation inside the conv scratch window


def _conv_scratch_rows(seq_len, ksize):
    return seq_len + _CONV_BASE + (ksize - 1) // 2


# ===================== in-kernel helpers =====================

def _layer_norm(x, g, b, eps=1e-5):
    mean = jnp.mean(x, axis=-1, keepdims=True)
    var = jnp.mean(jnp.square(x - mean), axis=-1, keepdims=True)
    return (x - mean) * jax.lax.rsqrt(var + eps) * g + b


def _conv1d_same(xpad_ref, x, w_tap, bias, seq_len, cin, cout, ksize, cdt):
    """'same'-padded Conv1d over time, computed as `ksize` shifted matmuls
    against a zero-padded VMEM scratch window (in-kernel im2col)."""
    pad = (ksize - 1) // 2
    xpad_ref[...] = jnp.zeros(xpad_ref.shape, xpad_ref.dtype)
    xpad_ref[_CONV_BASE:_CONV_BASE + seq_len, :cin] = x          # aligned-start store
    acc = jnp.zeros((seq_len, cout), jnp.float32) + bias
    for j in range(ksize):
        start = _CONV_BASE - pad + j
        acc = acc + jnp.dot(xpad_ref[start:start + seq_len, :cin].astype(cdt),
                            w_tap(j), preferred_element_type=jnp.float32)
    return acc


# ===================== fused Pallas kernels =====================

def _fft_stack_kernel(x_ref, keybias_ref, padmask_ref,
                      wqkv_ref, bqkv_ref, wo_ref, bo_ref, ln1g_ref, ln1b_ref,
                      w1_ref, b1_ref, w2_ref, b2_ref, ln2g_ref, ln2b_ref,
                      o_ref, xpad_ref, *, L, T, D, H, ksize):
    """All L FFT blocks (MHA + conv-FFN) for one batch element, fully in VMEM."""
    cdt = wqkv_ref.dtype                 # MXU compute dtype (bf16 or f32)
    F = w1_ref.shape[-1]
    x = x_ref[0]                         # (T, D) f32
    keybias = keybias_ref[0]             # (1, T) additive key mask (-1e9 on pads)
    padmask = padmask_ref[0]             # (T, 1) 1 = valid, 0 = pad

    for l in range(L):
        # ---------- multi-head self-attention sub-layer ----------
        xb = x.astype(cdt)
        oacc = jnp.zeros((T, D), jnp.float32)
        for h in range(H):
            # 1/sqrt(d_k) is folded into the Q projection weights at init.
            q = jnp.dot(xb, wqkv_ref[l, h],
                        preferred_element_type=jnp.float32) + bqkv_ref[l, h]
            k = jnp.dot(xb, wqkv_ref[l, H + h],
                        preferred_element_type=jnp.float32) + bqkv_ref[l, H + h]
            v = jnp.dot(xb, wqkv_ref[l, 2 * H + h],
                        preferred_element_type=jnp.float32) + bqkv_ref[l, 2 * H + h]
            s = jax.lax.dot_general(q.astype(cdt), k.astype(cdt),
                                    (((1,), (1,)), ((), ())),
                                    preferred_element_type=jnp.float32)
            s = s + keybias
            m = jnp.max(s, axis=-1, keepdims=True)
            p = jnp.exp(s - m)
            p = p / jnp.sum(p, axis=-1, keepdims=True)
            oh = jnp.dot(p.astype(cdt), v.astype(cdt),
                         preferred_element_type=jnp.float32)              # (T, dv)
            oacc = oacc + jnp.dot(oh.astype(cdt), wo_ref[l, h],
                                  preferred_element_type=jnp.float32)     # (T, D)
        o = oacc + bo_ref[l] + x                       # output proj bias + residual
        o = _layer_norm(o, ln1g_ref[l], ln1b_ref[l])
        x = o * padmask                                # zero padded rows

        # ---------- position-wise conv FFN sub-layer ----------
        h1 = _conv1d_same(xpad_ref, x, lambda j: w1_ref[l, j], b1_ref[l],
                          T, D, F, ksize, cdt)
        h1 = jnp.maximum(h1, 0.0)
        o2 = jnp.dot(h1.astype(cdt), w2_ref[l],
                     preferred_element_type=jnp.float32) + b2_ref[l] + x
        o2 = _layer_norm(o2, ln2g_ref[l], ln2b_ref[l])
        x = o2 * padmask

    o_ref[0] = x


def _var_predictor_kernel(x_ref, padmask_ref,
                          w1_ref, b1_ref, ln1g_ref, ln1b_ref,
                          w2_ref, b2_ref, ln2g_ref, ln2b_ref,
                          wlin_ref, blin_ref,
                          o_ref, xpad_ref, *, T, D, F, ksize):
    """conv -> relu -> LN -> conv -> relu -> LN -> linear(N=1) -> mask, fused."""
    cdt = w1_ref.dtype
    x = x_ref[0]                         # (T, D)
    padmask = padmask_ref[0]             # (T, 1)
    h = _conv1d_same(xpad_ref, x, lambda j: w1_ref[j], b1_ref[...], T, D, F, ksize, cdt)
    h = jnp.maximum(h, 0.0)
    h = _layer_norm(h, ln1g_ref[...], ln1b_ref[...])
    h = _conv1d_same(xpad_ref, h, lambda j: w2_ref[j], b2_ref[...], T, F, F, ksize, cdt)
    h = jnp.maximum(h, 0.0)
    h = _layer_norm(h, ln2g_ref[...], ln2b_ref[...])
    out = jnp.dot(h.astype(cdt), wlin_ref[...],
                  preferred_element_type=jnp.float32) + blin_ref[...]     # (T, 1)
    o_ref[0] = out * padmask


def _mel_postnet_kernel(x_ref, padmask_ref, wmel_ref, bmel_ref,
                        pw1_ref, pb1_ref, g1_ref, s1_ref,
                        pw2_ref, pb2_ref, g2_ref, s2_ref,
                        pw3_ref, pb3_ref, g3_ref, s3_ref,
                        mel_ref, post_ref, xpad_ref, *, T, M, C, ksize):
    """to_mel + PostNet (3 convs, BN scale/shift, tanh) + residual + masking."""
    cdt = wmel_ref.dtype
    x = x_ref[0]                         # (T, D_dec)
    padmask = padmask_ref[0]             # (T, 1)
    mel = jnp.dot(x.astype(cdt), wmel_ref[...],
                  preferred_element_type=jnp.float32) + bmel_ref[...]     # (T, M)
    # PostNet: BatchNorm in eval mode with running mean=0 / var=1 -> scale & shift.
    h = _conv1d_same(xpad_ref, mel, lambda j: pw1_ref[j], pb1_ref[...], T, M, C, ksize, cdt)
    h = jnp.tanh(h * g1_ref[...] + s1_ref[...])
    h = _conv1d_same(xpad_ref, h, lambda j: pw2_ref[j], pb2_ref[...], T, C, C, ksize, cdt)
    h = jnp.tanh(h * g2_ref[...] + s2_ref[...])
    h = _conv1d_same(xpad_ref, h, lambda j: pw3_ref[j], pb3_ref[...], T, C, M, ksize, cdt)
    h = h * g3_ref[...] + s3_ref[...]
    post = h + mel
    mel_ref[0] = mel * padmask
    post_ref[0] = post * padmask


# ===================== pallas_call wrappers =====================

_PARALLEL = pltpu.CompilerParams(dimension_semantics=("parallel",))


def _full_spec(a):
    n = a.ndim
    return pl.BlockSpec(a.shape, lambda *_: (0,) * n)


def _mask_inputs(mask, B, T):
    """mask: (B, T) bool, True = padded (or None)."""
    if mask is None:
        keybias = jnp.zeros((B, 1, T), jnp.float32)
        padmask = jnp.ones((B, T, 1), jnp.float32)
    else:
        keybias = jnp.where(mask, -1e9, 0.0).astype(jnp.float32)[:, None, :]
        padmask = (~mask).astype(jnp.float32)[:, :, None]
    return keybias, padmask


def fft_stack_forward(stack, x, mask):
    B, T, D = x.shape
    L = stack["wqkv"].shape[0]
    H = stack["n_head"]
    ksize = stack["kernel"]
    keybias, padmask = _mask_inputs(mask, B, T)
    names = ("wqkv", "bqkv", "wo", "bo", "ln1g", "ln1b",
             "w1", "b1", "w2", "b2", "ln2g", "ln2b")
    weights = [stack[n] for n in names]
    kernel = functools.partial(_fft_stack_kernel, L=L, T=T, D=D, H=H, ksize=ksize)
    return pl.pallas_call(
        kernel,
        out_shape=jax.ShapeDtypeStruct((B, T, D), jnp.float32),
        grid=(B,),
        in_specs=[pl.BlockSpec((1, T, D), lambda i: (i, 0, 0)),
                  pl.BlockSpec((1, 1, T), lambda i: (i, 0, 0)),
                  pl.BlockSpec((1, T, 1), lambda i: (i, 0, 0))]
                 + [_full_spec(w) for w in weights],
        out_specs=pl.BlockSpec((1, T, D), lambda i: (i, 0, 0)),
        scratch_shapes=[pltpu.VMEM((_conv_scratch_rows(T, ksize), D), jnp.float32)],
        compiler_params=_PARALLEL,
    )(x.astype(jnp.float32), keybias, padmask, *weights)


def encoder_forward(p, seq, mask):
    T = seq.shape[1]
    x = p["emb"][seq] + p["pos"][:T][None, :, :]
    return fft_stack_forward(p["stack"], x, mask)


def decoder_forward(p, x, mask):
    T = x.shape[1]
    x = x + p["pos"][:T][None, :, :]
    return fft_stack_forward(p["stack"], x, mask)


def variance_predictor_forward(p, x, mask):
    B, T, D = x.shape
    F = p["b1"].shape[-1]
    ksize = VP_KERNEL
    _, padmask = _mask_inputs(mask, B, T)
    names = ("w1", "b1", "ln1g", "ln1b", "w2", "b2", "ln2g", "ln2b", "wlin", "blin")
    weights = [p[n] for n in names]
    kernel = functools.partial(_var_predictor_kernel, T=T, D=D, F=F, ksize=ksize)
    out = pl.pallas_call(
        kernel,
        out_shape=jax.ShapeDtypeStruct((B, T, 1), jnp.float32),
        grid=(B,),
        in_specs=[pl.BlockSpec((1, T, D), lambda i: (i, 0, 0)),
                  pl.BlockSpec((1, T, 1), lambda i: (i, 0, 0))]
                 + [_full_spec(w) for w in weights],
        out_specs=pl.BlockSpec((1, T, 1), lambda i: (i, 0, 0)),
        scratch_shapes=[pltpu.VMEM((_conv_scratch_rows(T, ksize), max(D, F)), jnp.float32)],
        compiler_params=_PARALLEL,
    )(x.astype(jnp.float32), padmask, *weights)
    return out[..., 0]


def mel_postnet_forward(p, dec_out, mel_mask):
    B, T, D = dec_out.shape
    M, C, ksize = N_MELS, POSTNET_DIM, POSTNET_KERNEL
    _, padmask = _mask_inputs(mel_mask, B, T)
    names = ("wmel", "bmel", "pw1", "pb1", "g1", "s1",
             "pw2", "pb2", "g2", "s2", "pw3", "pb3", "g3", "s3")
    weights = [p[n] for n in names]
    kernel = functools.partial(_mel_postnet_kernel, T=T, M=M, C=C, ksize=ksize)
    mel, post = pl.pallas_call(
        kernel,
        out_shape=(jax.ShapeDtypeStruct((B, T, M), jnp.float32),
                   jax.ShapeDtypeStruct((B, T, M), jnp.float32)),
        grid=(B,),
        in_specs=[pl.BlockSpec((1, T, D), lambda i: (i, 0, 0)),
                  pl.BlockSpec((1, T, 1), lambda i: (i, 0, 0))]
                 + [_full_spec(w) for w in weights],
        out_specs=(pl.BlockSpec((1, T, M), lambda i: (i, 0, 0)),
                   pl.BlockSpec((1, T, M), lambda i: (i, 0, 0))),
        scratch_shapes=[pltpu.VMEM((_conv_scratch_rows(T, ksize), max(M, C)), jnp.float32)],
        compiler_params=_PARALLEL,
    )(dec_out.astype(jnp.float32), padmask, *weights)
    return mel, post


# ===================== plain-JAX glue =====================

def get_mask_from_lengths(lengths, max_len):
    ids = jnp.arange(max_len)[None, :]
    return ids >= lengths[:, None]          # True where padded


def sinusoid_table(n_pos, d_hid):
    pos = np.arange(n_pos)[:, None].astype(np.float64)
    i = np.arange(d_hid)[None, :]
    angle = pos / np.power(10000.0, 2 * (i // 2) / d_hid)
    table = np.zeros((n_pos, d_hid), dtype=np.float32)
    table[:, 0::2] = np.sin(angle[:, 0::2])
    table[:, 1::2] = np.cos(angle[:, 1::2])
    return jnp.asarray(table)


def length_regulate(x, d, max_mel_len):
    """Expand phoneme features by integer durations (gather, plain JAX glue)."""
    B, T, D = x.shape
    cum = jnp.cumsum(d.astype(jnp.int32), axis=1)
    frame_idx = jnp.arange(max_mel_len, dtype=jnp.int32)
    idx = jax.vmap(lambda c: jnp.searchsorted(c, frame_idx, side="right"))(cum)
    idx = jnp.minimum(idx, T - 1)
    idx3 = jnp.broadcast_to(idx[..., None], (B, max_mel_len, D))
    out = jnp.take_along_axis(x, idx3, axis=1)
    mel_len = cum[:, -1]
    return out, mel_len


# ===================== parameter init (packed, deterministic) =====================

def _repack_conv_taps(w):
    """PyTorch Conv1d weight (Cout, Cin, K) -> per-tap matmul operands (K, Cin, Cout)."""
    return jnp.transpose(w, (2, 1, 0))


def _split_heads_cols(w, n_head):
    """(D, H*dk) -> (H, D, dk) per-head matmul operands (contiguous-column heads)."""
    d_in, hdk = w.shape
    dk = hdk // n_head
    return jnp.transpose(w.reshape(d_in, n_head, dk), (1, 0, 2))


def init_fft_stack(key, n_layers, d_model, n_head, d_k, d_v, d_inner, ksize):
    assert d_k == d_v
    # bf16 MXU operands only where dims are large enough to matter; tiny
    # sub-encoders (d_model 2 / 8) stay f32 (v5e-safe either way).
    wdt = jnp.bfloat16 if (d_model >= 8 and d_k >= 8) else jnp.float32
    scale = 1.0 / float(np.sqrt(d_k))
    wqkv, wo, w1, w2 = [], [], [], []
    for lk in jax.random.split(key, n_layers):
        kq, kk, kv, ko, kc1, kc2 = jax.random.split(lk, 6)
        wq = jax.random.normal(kq, (d_model, n_head * d_k), jnp.float32) * 0.02
        wk = jax.random.normal(kk, (d_model, n_head * d_k), jnp.float32) * 0.02
        wv = jax.random.normal(kv, (d_model, n_head * d_v), jnp.float32) * 0.02
        # Fold the 1/sqrt(d_k) attention scale into the Q projection.
        wqkv.append(jnp.concatenate([_split_heads_cols(wq * scale, n_head),
                                     _split_heads_cols(wk, n_head),
                                     _split_heads_cols(wv, n_head)], axis=0))
        wo.append((jax.random.normal(ko, (n_head * d_v, d_model), jnp.float32) * 0.02)
                  .reshape(n_head, d_v, d_model))
        c1 = jax.random.normal(kc1, (d_inner, d_model, ksize), jnp.float32) * 0.02
        c2 = jax.random.normal(kc2, (d_model, d_inner, 1), jnp.float32) * 0.02
        w1.append(_repack_conv_taps(c1))              # (ksize, d_model, d_inner)
        w2.append(jnp.transpose(c2[:, :, 0]))         # (d_inner, d_model)
    return {
        "wqkv": jnp.stack(wqkv).astype(wdt),                          # (L, 3H, D, dk)
        "bqkv": jnp.zeros((n_layers, 3 * n_head, 1, d_k), jnp.float32),
        "wo": jnp.stack(wo).astype(wdt),                              # (L, H, dv, D)
        "bo": jnp.zeros((n_layers, 1, d_model), jnp.float32),
        "ln1g": jnp.ones((n_layers, 1, d_model), jnp.float32),
        "ln1b": jnp.zeros((n_layers, 1, d_model), jnp.float32),
        "w1": jnp.stack(w1).astype(wdt),                              # (L, K, D, F)
        "b1": jnp.zeros((n_layers, 1, d_inner), jnp.float32),
        "w2": jnp.stack(w2).astype(wdt),                              # (L, F, D)
        "b2": jnp.zeros((n_layers, 1, d_model), jnp.float32),
        "ln2g": jnp.ones((n_layers, 1, d_model), jnp.float32),
        "ln2b": jnp.zeros((n_layers, 1, d_model), jnp.float32),
        "n_head": n_head, "d_k": d_k, "d_v": d_v, "kernel": ksize,
    }


def init_encoder(key, vocab, d_model, n_layers, n_head, d_k, d_v, d_inner):
    k_emb, k_stack = jax.random.split(key)
    emb = jax.random.normal(k_emb, (vocab, d_model), jnp.float32) * 0.1
    emb = emb.at[0].set(0.0)   # padding_idx = 0
    return {"emb": emb,
            "pos": sinusoid_table(MAX_POS, d_model),
            "stack": init_fft_stack(k_stack, n_layers, d_model, n_head, d_k, d_v,
                                    d_inner, FFT_KERNEL[0])}


def init_decoder(key, d_model, n_layers, n_head, d_k, d_v, d_inner):
    return {"pos": sinusoid_table(MAX_POS, d_model),
            "stack": init_fft_stack(key, n_layers, d_model, n_head, d_k, d_v,
                                    d_inner, FFT_KERNEL[0])}


def init_variance_predictor(key, d_model):
    k1, k2, k3 = jax.random.split(key, 3)
    c1 = jax.random.normal(k1, (VP_FILTER, d_model, VP_KERNEL), jnp.float32) * 0.02
    c2 = jax.random.normal(k2, (VP_FILTER, VP_FILTER, VP_KERNEL), jnp.float32) * 0.02
    wlin = jax.random.normal(k3, (VP_FILTER, 1), jnp.float32) * 0.02
    return {"w1": _repack_conv_taps(c1).astype(jnp.bfloat16),
            "b1": jnp.zeros((1, VP_FILTER), jnp.float32),
            "ln1g": jnp.ones((1, VP_FILTER), jnp.float32),
            "ln1b": jnp.zeros((1, VP_FILTER), jnp.float32),
            "w2": _repack_conv_taps(c2).astype(jnp.bfloat16),
            "b2": jnp.zeros((1, VP_FILTER), jnp.float32),
            "ln2g": jnp.ones((1, VP_FILTER), jnp.float32),
            "ln2b": jnp.zeros((1, VP_FILTER), jnp.float32),
            "wlin": wlin.astype(jnp.bfloat16),
            "blin": jnp.zeros((1, 1), jnp.float32)}


def init_variance_adaptor(key, d_model):
    k1, k2, k3, k4, k5 = jax.random.split(key, 5)
    return {"duration": init_variance_predictor(k1, d_model),
            "pitch": init_variance_predictor(k2, d_model),
            "energy": init_variance_predictor(k3, d_model),
            "pitch_bins": jnp.linspace(0.0, 1.0, N_BINS - 1),
            "pitch_emb": jax.random.normal(k4, (N_BINS, d_model), jnp.float32) * 0.1,
            "energy_bins": jnp.linspace(0.0, 1.0, N_BINS - 1),
            "energy_emb": jax.random.normal(k5, (N_BINS, d_model), jnp.float32) * 0.1}


def init_mel_postnet(key, d_dec):
    kmel, k1, k2, k3 = jax.random.split(key, 4)
    wmel = jax.random.normal(kmel, (d_dec, N_MELS), jnp.float32) * 0.02
    c1 = jax.random.normal(k1, (POSTNET_DIM, N_MELS, POSTNET_KERNEL), jnp.float32) * 0.02
    c2 = jax.random.normal(k2, (POSTNET_DIM, POSTNET_DIM, POSTNET_KERNEL), jnp.float32) * 0.02
    c3 = jax.random.normal(k3, (N_MELS, POSTNET_DIM, POSTNET_KERNEL), jnp.float32) * 0.02
    return {"wmel": wmel.astype(jnp.bfloat16), "bmel": jnp.zeros((1, N_MELS), jnp.float32),
            "pw1": _repack_conv_taps(c1).astype(jnp.bfloat16),
            "pb1": jnp.zeros((1, POSTNET_DIM), jnp.float32),
            "g1": jnp.ones((1, POSTNET_DIM), jnp.float32),
            "s1": jnp.zeros((1, POSTNET_DIM), jnp.float32),
            "pw2": _repack_conv_taps(c2).astype(jnp.bfloat16),
            "pb2": jnp.zeros((1, POSTNET_DIM), jnp.float32),
            "g2": jnp.ones((1, POSTNET_DIM), jnp.float32),
            "s2": jnp.zeros((1, POSTNET_DIM), jnp.float32),
            "pw3": _repack_conv_taps(c3).astype(jnp.bfloat16),
            "pb3": jnp.zeros((1, N_MELS), jnp.float32),
            "g3": jnp.ones((1, N_MELS), jnp.float32),
            "s3": jnp.zeros((1, N_MELS), jnp.float32)}


def init_fastspeech2(key):
    keys = jax.random.split(key, 7)
    enc_vocab = N_SYMBOLS + UNK_CLS + 1
    unk_vocab = N_SYMBOLS + 1
    return {
        "spker_embeds": jax.random.normal(keys[0], (1, SPKER_DIM), jnp.float32) * 0.01,
        "encoder": init_encoder(keys[1], enc_vocab, ENC_HIDDEN, ENC_LAYERS, ENC_HEAD,
                                ENC_HIDDEN // ENC_HEAD, ENC_HIDDEN // ENC_HEAD, FFT_FILTER),
        "unk_predicter": init_encoder(keys[2], unk_vocab, 2, 1, 1, 1, 1, 16),
        "unk_classifier": init_encoder(keys[3], unk_vocab, UNK_CLS, ENC_LAYERS, ENC_HEAD,
                                       UNK_CLS // ENC_HEAD, UNK_CLS // ENC_HEAD, FFT_FILTER),
        "variance_adaptor": init_variance_adaptor(keys[4], ENC_HIDDEN),
        "decoder": init_decoder(keys[5], DEC_HIDDEN, DEC_LAYERS, DEC_HEAD,
                                DEC_HIDDEN // DEC_HEAD, DEC_HIDDEN // DEC_HEAD, FFT_FILTER),
        "mel_postnet": init_mel_postnet(keys[6], DEC_HIDDEN),
    }


# ===================== forward pass =====================

def variance_adaptor_forward(p, x, src_mask, mel_mask, d_gt, p_gt, e_gt, max_mel_len):
    d_pred = variance_predictor_forward(p["duration"], x, src_mask)
    if d_gt is not None:
        x, mel_len = length_regulate(x, d_gt, max_mel_len)
    else:
        d_rounded = jnp.clip(jnp.round(jnp.exp(d_pred) - 1.0), 0).astype(jnp.int32)
        if src_mask is not None:
            d_rounded = jnp.where(src_mask, 0, d_rounded)
        x, mel_len = length_regulate(x, d_rounded, max_mel_len)
        mel_mask = get_mask_from_lengths(mel_len, max_mel_len)

    p_pred = variance_predictor_forward(p["pitch"], x, mel_mask)
    pitch_val = p_gt if p_gt is not None else p_pred
    x = x + p["pitch_emb"][jnp.searchsorted(p["pitch_bins"], pitch_val)]

    e_pred = variance_predictor_forward(p["energy"], x, mel_mask)
    energy_val = e_gt if e_gt is not None else e_pred
    x = x + p["energy_emb"][jnp.searchsorted(p["energy_bins"], energy_val)]

    return x, d_pred, p_pred, e_pred, mel_len, mel_mask


def fastspeech2_forward(params, spker_ids, text_seq, text_len, unk_text=None,
                        unk_text_len=None, unk_place=None, d_gt=None, p_gt=None,
                        e_gt=None, mel_len=None, max_text_len=None, max_mel_len=None,
                        max_unk_len=None, unk_id=None, unk_cls=None):
    text_mask = get_mask_from_lengths(text_len, max_text_len)
    mel_mask = get_mask_from_lengths(mel_len, max_mel_len) if mel_len is not None else None
    spker_embed = params["spker_embeds"][spker_ids]                  # (B, SPKER_DIM)

    unk_place_predict = encoder_forward(params["unk_predicter"], text_seq, text_mask)

    if unk_text is None:
        # TODO(synk): process_unk is host-side variable-length resequencing (python/numpy
        # loop with per-example padding); no clean static-shape Pallas equivalent.
        raise NotImplementedError("inference path requires host-side process_unk")

    unk_text_mask = (get_mask_from_lengths(unk_text_len, max_unk_len)
                     if unk_text_len is not None else None)
    unk_predict = encoder_forward(params["unk_classifier"], unk_text, unk_text_mask)
    unk_tok = jnp.argmax(unk_predict, axis=-1) + N_SYMBOLS + 1

    if unk_id is None:
        unk_tok_place = (unk_text == UNK_INDEX).astype(unk_text.dtype)
        unk_text = (unk_tok.astype(unk_text.dtype) * unk_tok_place
                    + unk_text * (unk_tok_place == 0))
    else:
        unk_text = unk_cls + unk_text * (unk_id == 0)

    encoder_output = encoder_forward(params["encoder"], unk_text, unk_text_mask)
    encoder_output = encoder_output + spker_embed[:, None, :]        # SpeakerIntegrator

    (va_out, d_pred, p_pred, e_pred, mel_len2, mel_mask2) = variance_adaptor_forward(
        params["variance_adaptor"], encoder_output, unk_text_mask, mel_mask,
        d_gt, p_gt, e_gt, max_mel_len)
    if d_gt is None:
        mel_len, mel_mask = mel_len2, mel_mask2

    va_out = va_out + spker_embed[:, None, :]                        # SpeakerIntegrator
    decoder_output = decoder_forward(params["decoder"], va_out, mel_mask)

    mel, mel_postnet = mel_postnet_forward(params["mel_postnet"], decoder_output, mel_mask)

    pred = (mel, mel_postnet, d_pred, p_pred, e_pred, unk_predict, unk_place_predict)
    return pred, unk_text_mask, mel_mask, mel_len


# ===================== example run =====================

if __name__ == "__main__":
    key = jax.random.PRNGKey(0)
    pkey, dkey = jax.random.split(key)
    params = init_fastspeech2(pkey)

    B = 2
    max_text_len = 8
    max_unk_len = 10
    max_mel_len = 24

    k1, k2, k3, k4, k5 = jax.random.split(dkey, 5)

    spker_ids = jnp.zeros((B,), jnp.int32)

    text_len = jnp.array([8, 6], jnp.int32)
    text_seq = jax.random.randint(k1, (B, max_text_len), 1, N_SYMBOLS, dtype=jnp.int32)
    text_seq = jnp.where(get_mask_from_lengths(text_len, max_text_len), 0, text_seq)

    unk_text_len = jnp.array([10, 7], jnp.int32)
    unk_text = jax.random.randint(k2, (B, max_unk_len), 1, N_SYMBOLS, dtype=jnp.int32)
    unk_text = unk_text.at[0, 3].set(UNK_INDEX).at[1, 2].set(UNK_INDEX)
    unk_pad = get_mask_from_lengths(unk_text_len, max_unk_len)
    unk_text = jnp.where(unk_pad, 0, unk_text)

    d_gt = jax.random.randint(k3, (B, max_unk_len), 1, 3, dtype=jnp.int32)
    d_gt = jnp.where(unk_pad, 0, d_gt)
    mel_len = jnp.sum(d_gt, axis=1)

    p_gt = jax.random.uniform(k4, (B, max_mel_len), jnp.float32)
    e_gt = jax.random.uniform(k5, (B, max_mel_len), jnp.float32)

    outputs = fastspeech2_forward(
        params, spker_ids, text_seq, text_len,
        unk_text=unk_text, unk_text_len=unk_text_len,
        d_gt=d_gt, p_gt=p_gt, e_gt=e_gt, mel_len=mel_len,
        max_text_len=max_text_len, max_mel_len=max_mel_len, max_unk_len=max_unk_len,
        unk_id=None, unk_cls=None)

    jax.block_until_ready(outputs)
    print("KERNEL_OK")
</pallas_src>

<mosaic_0001>
module attributes {stable_mosaic.version = 11 : i64} {
  func.func @_fft_stack_kernel(%arg0: i32, %arg1: memref<1x8x2xf32, #tpu.memory_space<vmem>>, %arg2: memref<1x1x8xf32, #tpu.memory_space<vmem>>, %arg3: memref<1x8x1xf32, #tpu.memory_space<vmem>>, %arg4: memref<1x3x2x1xf32, #tpu.memory_space<vmem>>, %arg5: memref<1x3x1x1xf32, #tpu.memory_space<vmem>>, %arg6: memref<1x1x1x2xf32, #tpu.memory_space<vmem>>, %arg7: memref<1x1x2xf32, #tpu.memory_space<vmem>>, %arg8: memref<1x1x2xf32, #tpu.memory_space<vmem>>, %arg9: memref<1x1x2xf32, #tpu.memory_space<vmem>>, %arg10: memref<1x9x2x16xf32, #tpu.memory_space<vmem>>, %arg11: memref<1x1x16xf32, #tpu.memory_space<vmem>>, %arg12: memref<1x16x2xf32, #tpu.memory_space<vmem>>, %arg13: memref<1x1x2xf32, #tpu.memory_space<vmem>>, %arg14: memref<1x1x2xf32, #tpu.memory_space<vmem>>, %arg15: memref<1x1x2xf32, #tpu.memory_space<vmem>>, %arg16: memref<1x8x2xf32, #tpu.memory_space<vmem>>, %arg17: memref<20x2xf32, #tpu.memory_space<vmem>>) attributes {dimension_semantics = [#tpu.dimension_semantics<parallel>], iteration_bounds = array<i64: 2>, scalar_prefetch = 0 : i64, scratch_operands = 1 : i64, tpu.core_type = #tpu.core_type<tc>, window_params = [{transform_indices = @transform_0, window_bounds = array<i64: 1, 8, 2>}, {transform_indices = @transform_1, window_bounds = array<i64: 1, 1, 8>}, {transform_indices = @transform_2, window_bounds = array<i64: 1, 8, 1>}, {pipeline_mode = #tpu.pipeline_mode<synchronous>, transform_indices = @transform_3, window_bounds = array<i64: 1, 3, 2, 1>}, {pipeline_mode = #tpu.pipeline_mode<synchronous>, transform_indices = @transform_4, window_bounds = array<i64: 1, 3, 1, 1>}, {pipeline_mode = #tpu.pipeline_mode<synchronous>, transform_indices = @transform_5, window_bounds = array<i64: 1, 1, 1, 2>}, {pipeline_mode = #tpu.pipeline_mode<synchronous>, transform_indices = @transform_6, window_bounds = array<i64: 1, 1, 2>}, {pipeline_mode = #tpu.pipeline_mode<synchronous>, transform_indices = @transform_7, window_bounds = array<i64: 1, 1, 2>}, {pipeline_mode = #tpu.pipeline_mode<synchronous>, transform_indices = @transform_8, window_bounds = array<i64: 1, 1, 2>}, {pipeline_mode = #tpu.pipeline_mode<synchronous>, transform_indices = @transform_9, window_bounds = array<i64: 1, 9, 2, 16>}, {pipeline_mode = #tpu.pipeline_mode<synchronous>, transform_indices = @transform_10, window_bounds = array<i64: 1, 1, 16>}, {pipeline_mode = #tpu.pipeline_mode<synchronous>, transform_indices = @transform_11, window_bounds = array<i64: 1, 16, 2>}, {pipeline_mode = #tpu.pipeline_mode<synchronous>, transform_indices = @transform_12, window_bounds = array<i64: 1, 1, 2>}, {pipeline_mode = #tpu.pipeline_mode<synchronous>, transform_indices = @transform_13, window_bounds = array<i64: 1, 1, 2>}, {pipeline_mode = #tpu.pipeline_mode<synchronous>, transform_indices = @transform_14, window_bounds = array<i64: 1, 1, 2>}, {transform_indices = @transform_15, window_bounds = array<i64: 1, 8, 2>}]} {
    %c0 = arith.constant 0 : index
    %c0_0 = arith.constant 0 : index
    %c0_1 = arith.constant 0 : index
    %0 = vector.load %arg1[%c0, %c0_0, %c0_1] : memref<1x8x2xf32, #tpu.memory_space<vmem>>, vector<1x8x2xf32>
    %1 = vector.shape_cast %0 : vector<1x8x2xf32> to vector<8x2xf32>
    %c0_2 = arith.constant 0 : index
    %c0_3 = arith.constant 0 : index
    %c0_4 = arith.constant 0 : index
    %2 = vector.load %arg2[%c0_2, %c0_3, %c0_4] : memref<1x1x8xf32, #tpu.memory_space<vmem>>, vector<1x1x8xf32>
    %3 = vector.shape_cast %2 : vector<1x1x8xf32> to vector<1x8xf32>
    %c0_5 = arith.constant 0 : index
    %c0_6 = arith.constant 0 : index
    %c0_7 = arith.constant 0 : index
    %4 = vector.load %arg3[%c0_5, %c0_6, %c0_7] : memref<1x8x1xf32, #tpu.memory_space<vmem>>, vector<1x8x1xf32>
    %5 = vector.shape_cast %4 : vector<1x8x1xf32> to vector<8x1xf32>
    %cst = arith.constant 0.000000e+00 : f32
    %6 = vector.broadcast %cst : f32 to vector<8x2xf32>
    %c0_8 = arith.constant 0 : index
    %c0_9 = arith.constant 0 : index
    %c0_10 = arith.constant 0 : index
    %c0_11 = arith.constant 0 : index
    %7 = vector.load %arg4[%c0_8, %c0_9, %c0_10, %c0_11] : memref<1x3x2x1xf32, #tpu.memory_space<vmem>>, vector<1x1x2x1xf32>
    %8 = vector.shape_cast %7 : vector<1x1x2x1xf32> to vector<2x1xf32>
    %cst_12 = arith.constant dense<0.000000e+00> : vector<8x1xf32>
    %9 = tpu.matmul %1, %8, %cst_12 {dimension_numbers = #tpu.dot_dimension_numbers<[1], [0], [0], [1], [0, 0, 1, 1], [], []>} : vector<8x2xf32>, vector<2x1xf32>, vector<8x1xf32> -> vector<8x1xf32>
    %c0_13 = arith.constant 0 : index
    %c0_14 = arith.constant 0 : index
    %c0_15 = arith.constant 0 : index
    %c0_16 = arith.constant 0 : index
    %10 = vector.load %arg5[%c0_13, %c0_14, %c0_15, %c0_16] : memref<1x3x1x1xf32, #tpu.memory_space<vmem>>, vector<1x1x1x1xf32>
    %11 = vector.shape_cast %10 : vector<1x1x1x1xf32> to vector<1x1xf32>
    %12 = vector.broadcast %11 : vector<1x1xf32> to vector<8x1xf32>
    %13 = arith.addf %9, %12 : vector<8x1xf32>
    %c0_17 = arith.constant 0 : index
    %c1 = arith.constant 1 : index
    %c0_18 = arith.constant 0 : index
    %c0_19 = arith.constant 0 : index
    %14 = vector.load %arg4[%c0_17, %c1, %c0_18, %c0_19] : memref<1x3x2x1xf32, #tpu.memory_space<vmem>>, vector<1x1x2x1xf32>
    %15 = vector.shape_cast %14 : vector<1x1x2x1xf32> to vector<2x1xf32>
    %cst_20 = arith.constant dense<0.000000e+00> : vector<8x1xf32>
    %16 = tpu.matmul %1, %15, %cst_20 {dimension_numbers = #tpu.dot_dimension_numbers<[1], [0], [0], [1], [0, 0, 1, 1], [], []>} : vector<8x2xf32>, vector<2x1xf32>, vector<8x1xf32> -> vector<8x1xf32>
    %c0_21 = arith.constant 0 : index
    %c1_22 = arith.constant 1 : index
    %c0_23 = arith.constant 0 : index
    %c0_24 = arith.constant 0 : index
    %17 = vector.load %arg5[%c0_21, %c1_22, %c0_23, %c0_24] : memref<1x3x1x1xf32, #tpu.memory_space<vmem>>, vector<1x1x1x1xf32>
    %18 = vector.shape_cast %17 : vector<1x1x1x1xf32> to vector<1x1xf32>
    %19 = vector.broadcast %18 : vector<1x1xf32> to vector<8x1xf32>
    %20 = arith.addf %16, %19 : vector<8x1xf32>
    %c0_25 = arith.constant 0 : index
    %c2 = arith.constant 2 : index
    %c0_26 = arith.constant 0 : index
    %c0_27 = arith.constant 0 : index
    %21 = vector.load %arg4[%c0_25, %c2, %c0_26, %c0_27] : memref<1x3x2x1xf32, #tpu.memory_space<vmem>>, vector<1x1x2x1xf32>
    %22 = vector.shape_cast %21 : vector<1x1x2x1xf32> to vector<2x1xf32>
    %cst_28 = arith.constant dense<0.000000e+00> : vector<8x1xf32>
    %23 = tpu.matmul %1, %22, %cst_28 {dimension_numbers = #tpu.dot_dimension_numbers<[1], [0], [0], [1], [0, 0, 1, 1], [], []>} : vector<8x2xf32>, vector<2x1xf32>, vector<8x1xf32> -> vector<8x1xf32>
    %c0_29 = arith.constant 0 : index
    %c2_30 = arith.constant 2 : index
    %c0_31 = arith.constant 0 : index
    %c0_32 = arith.constant 0 : index
    %24 = vector.load %arg5[%c0_29, %c2_30, %c0_31, %c0_32] : memref<1x3x1x1xf32, #tpu.memory_space<vmem>>, vector<1x1x1x1xf32>
    %25 = vector.shape_cast %24 : vector<1x1x1x1xf32> to vector<1x1xf32>
    %26 = vector.broadcast %25 : vector<1x1xf32> to vector<8x1xf32>
    %27 = arith.addf %23, %26 : vector<8x1xf32>
    %cst_33 = arith.constant dense<0.000000e+00> : vector<8x8xf32>
    %28 = tpu.matmul %13, %20, %cst_33 {dimension_numbers = #tpu.dot_dimension_numbers<[1], [1], [0], [0], [0, 0, 1, 0], [], []>} : vector<8x1xf32>, vector<8x1xf32>, vector<8x8xf32> -> vector<8x8xf32>
    %29 = vector.broadcast %3 : vector<1x8xf32> to vector<8x8xf32>
    %30 = arith.addf %28, %29 : vector<8x8xf32>
    %cst_34 = arith.constant dense<0xFF800000> : vector<8xf32>
    %31 = vector.multi_reduction <maximumf>, %30, %cst_34 [1] : vector<8x8xf32> to vector<8xf32>
    %32 = vector.shape_cast %31 : vector<8xf32> to vector<8x1xf32>
    %33 = vector.broadcast %32 : vector<8x1xf32> to vector<8x8xf32>
    %34 = arith.subf %30, %33 : vector<8x8xf32>
    %35 = math.exp %34 : vector<8x8xf32>
    %cst_35 = arith.constant dense<0.000000e+00> : vector<8xf32>
    %36 = vector.multi_reduction <add>, %35, %cst_35 [1] : vector<8x8xf32> to vector<8xf32>
    %37 = vector.shape_cast %36 : vector<8xf32> to vector<8x1xf32>
    %38 = vector.broadcast %37 : vector<8x1xf32> to vector<8x8xf32>
    %39 = arith.divf %35, %38 : vector<8x8xf32>
    %cst_36 = arith.constant dense<0.000000e+00> : vector<8x1xf32>
    %40 = tpu.matmul %39, %27, %cst_36 {dimension_numbers = #tpu.dot_dimension_numbers<[1], [0], [0], [1], [0, 0, 1, 1], [], []>} : vector<8x8xf32>, vector<8x1xf32>, vector<8x1xf32> -> vector<8x1xf32>
    %c0_37 = arith.constant 0 : index
    %c0_38 = arith.constant 0 : index
    %c0_39 = arith.constant 0 : index
    %c0_40 = arith.constant 0 : index
    %41 = vector.load %arg6[%c0_37, %c0_38, %c0_39, %c0_40] : memref<1x1x1x2xf32, #tpu.memory_space<vmem>>, vector<1x1x1x2xf32>
    %42 = vector.shape_cast %41 : vector<1x1x1x2xf32> to vector<1x2xf32>
    %cst_41 = arith.constant dense<0.000000e+00> : vector<8x2xf32>
    %43 = tpu.matmul %40, %42, %cst_41 {dimension_numbers = #tpu.dot_dimension_numbers<[1], [0], [0], [1], [0, 0, 1, 1], [], []>} : vector<8x1xf32>, vector<1x2xf32>, vector<8x2xf32> -> vector<8x2xf32>
    %44 = arith.addf %6, %43 : vector<8x2xf32>
    %c0_42 = arith.constant 0 : index
    %c0_43 = arith.constant 0 : index
    %c0_44 = arith.constant 0 : index
    %45 = vector.load %arg7[%c0_42, %c0_43, %c0_44] : memref<1x1x2xf32, #tpu.memory_space<vmem>>, vector<1x1x2xf32>
    %46 = vector.shape_cast %45 : vector<1x1x2xf32> to vector<1x2xf32>
    %47 = vector.broadcast %46 : vector<1x2xf32> to vector<8x2xf32>
    %48 = arith.addf %44, %47 : vector<8x2xf32>
    %49 = arith.addf %48, %1 : vector<8x2xf32>
    %c0_45 = arith.constant 0 : index
    %c0_46 = arith.constant 0 : index
    %c0_47 = arith.constant 0 : index
    %50 = vector.load %arg8[%c0_45, %c0_46, %c0_47] : memref<1x1x2xf32, #tpu.memory_space<vmem>>, vector<1x1x2xf32>
    %51 = vector.shape_cast %50 : vector<1x1x2xf32> to vector<1x2xf32>
    %c0_48 = arith.constant 0 : index
    %c0_49 = arith.constant 0 : index
    %c0_50 = arith.constant 0 : index
    %52 = vector.load %arg9[%c0_48, %c0_49, %c0_50] : memref<1x1x2xf32, #tpu.memory_space<vmem>>, vector<1x1x2xf32>
    %53 = vector.shape_cast %52 : vector<1x1x2xf32> to vector<1x2xf32>
    %cst_51 = arith.constant dense<0.000000e+00> : vector<8xf32>
    %54 = vector.multi_reduction <add>, %49, %cst_51 [1] : vector<8x2xf32> to vector<8xf32>
    %55 = vector.shape_cast %54 : vector<8xf32> to vector<8x1xf32>
    %cst_52 = arith.constant 2.000000e+00 : f32
    %56 = vector.broadcast %cst_52 : f32 to vector<8x1xf32>
    %57 = arith.divf %55, %56 : vector<8x1xf32>
    %58 = vector.broadcast %57 : vector<8x1xf32> to vector<8x2xf32>
    %59 = arith.subf %49, %58 : vector<8x2xf32>
    %60 = arith.mulf %59, %59 : vector<8x2xf32>
    %cst_53 = arith.constant dense<0.000000e+00> : vector<8xf32>
    %61 = vector.multi_reduction <add>, %60, %cst_53 [1] : vector<8x2xf32> to vector<8xf32>
    %62 = vector.shape_cast %61 : vector<8xf32> to vector<8x1xf32>
    %cst_54 = arith.constant 2.000000e+00 : f32
    %63 = vector.broadcast %cst_54 : f32 to vector<8x1xf32>
    %64 = arith.divf %62, %63 : vector<8x1xf32>
    %65 = vector.broadcast %57 : vector<8x1xf32> to vector<8x2xf32>
    %66 = arith.subf %49, %65 : vector<8x2xf32>
    %cst_55 = arith.constant 9.99999974E-6 : f32
    %67 = vector.broadcast %cst_55 : f32 to vector<8x1xf32>
    %68 = arith.addf %64, %67 : vector<8x1xf32>
    %69 = math.rsqrt %68 : vector<8x1xf32>
    %70 = vector.broadcast %69 : vector<8x1xf32> to vector<8x2xf32>
    %71 = arith.mulf %66, %70 : vector<8x2xf32>
    %72 = vector.broadcast %51 : vector<1x2xf32> to vector<8x2xf32>
    %73 = arith.mulf %71, %72 : vector<8x2xf32>
    %74 = vector.broadcast %53 : vector<1x2xf32> to vector<8x2xf32>
    %75 = arith.addf %73, %74 : vector<8x2xf32>
    %76 = vector.broadcast %5 : vector<8x1xf32> to vector<8x2xf32>
    %77 = arith.mulf %75, %76 : vector<8x2xf32>
    %c0_56 = arith.constant 0 : index
    %c0_57 = arith.constant 0 : index
    %c0_58 = arith.constant 0 : index
    %78 = vector.load %arg11[%c0_56, %c0_57, %c0_58] : memref<1x1x16xf32, #tpu.memory_space<vmem>>, vector<1x1x16xf32>
    %79 = vector.shape_cast %78 : vector<1x1x16xf32> to vector<1x16xf32>
    %cst_59 = arith.constant 0.000000e+00 : f32
    %80 = vector.broadcast %cst_59 : f32 to vector<20x2xf32>
    %c0_60 = arith.constant 0 : index
    %c0_61 = arith.constant 0 : index
    %81 = vector.load %arg17[%c0_60, %c0_61] : memref<20x2xf32, #tpu.memory_space<vmem>>, vector<20x2xf32>
    tpu.vector_store %arg17[%c0_60, %c0_61], %80 {strides = array<i32>} : memref<20x2xf32, #tpu.memory_space<vmem>>, vector<20x2xf32>,
    %c8 = arith.constant 8 : index
    %c0_62 = arith.constant 0 : index
    %82 = vector.load %arg17[%c8, %c0_62] : memref<20x2xf32, #tpu.memory_space<vmem>>, vector<8x2xf32>
    tpu.vector_store %arg17[%c8, %c0_62], %77 {strides = array<i32>} : memref<20x2xf32, #tpu.memory_space<vmem>>, vector<8x2xf32>,
    %cst_63 = arith.constant 0.000000e+00 : f32
    %83 = vector.broadcast %cst_63 : f32 to vector<8x16xf32>
    %84 = vector.broadcast %79 : vector<1x16xf32> to vector<8x16xf32>
    %85 = arith.addf %83, %84 : vector<8x16xf32>
    %c4 = arith.constant 4 : index
    %c0_64 = arith.constant 0 : index
    %86 = vector.load %arg17[%c4, %c0_64] : memref<20x2xf32, #tpu.memory_space<vmem>>, vector<8x2xf32>
    %c0_65 = arith.constant 0 : index
    %c0_66 = arith.constant 0 : index
    %c0_67 = arith.constant 0 : index
    %c0_68 = arith.constant 0 : index
    %87 = vector.load %arg10[%c0_65, %c0_66, %c0_67, %c0_68] : memref<1x9x2x16xf32, #tpu.memory_space<vmem>>, vector<1x1x2x16xf32>
    %88 = vector.shape_cast %87 : vector<1x1x2x16xf32> to vector<2x16xf32>
    %cst_69 = arith.constant dense<0.000000e+00> : vector<8x16xf32>
    %89 = tpu.matmul %86, %88, %cst_69 {dimension_numbers = #tpu.dot_dimension_numbers<[1], [0], [0], [1], [0, 0, 1, 1], [], []>} : vector<8x2xf32>, vector<2x16xf32>, vector<8x16xf32> -> vector<8x16xf32>
    %90 = arith.addf %85, %89 : vector<8x16xf32>
    %c5 = arith.constant 5 : index
    %c0_70 = arith.constant 0 : index
    %91 = vector.load %arg17[%c5, %c0_70] : memref<20x2xf32, #tpu.memory_space<vmem>>, vector<8x2xf32>
    %c0_71 = arith.constant 0 : index
    %c1_72 = arith.constant 1 : index
    %c0_73 = arith.constant 0 : index
    %c0_74 = arith.constant 0 : index
    %92 = vector.load %arg10[%c0_71, %c1_72, %c0_73, %c0_74] : memref<1x9x2x16xf32, #tpu.memory_space<vmem>>, vector<1x1x2x16xf32>
    %93 = vector.shape_cast %92 : vector<1x1x2x16xf32> to vector<2x16xf32>
    %cst_75 = arith.constant dense<0.000000e+00> : vector<8x16xf32>
    %94 = tpu.matmul %91, %93, %cst_75 {dimension_numbers = #tpu.dot_dimension_numbers<[1], [0], [0], [1], [0, 0, 1, 1], [], []>} : vector<8x2xf32>, vector<2x16xf32>, vector<8x16xf32> -> vector<8x16xf32>
    %95 = arith.addf %90, %94 : vector<8x16xf32>
    %c6 = arith.constant 6 : index
    %c0_76 = arith.constant 0 : index
    %96 = vector.load %arg17[%c6, %c0_76] : memref<20x2xf32, #tpu.memory_space<vmem>>, vector<8x2xf32>
    %c0_77 = arith.constant 0 : index
    %c2_78 = arith.constant 2 : index
    %c0_79 = arith.constant 0 : index
    %c0_80 = arith.constant 0 : index
    %97 = vector.load %arg10[%c0_77, %c2_78, %c0_79, %c0_80] : memref<1x9x2x16xf32, #tpu.memory_space<vmem>>, vector<1x1x2x16xf32>
    %98 = vector.shape_cast %97 : vector<1x1x2x16xf32> to vector<2x16xf32>
    %cst_81 = arith.constant dense<0.000000e+00> : vector<8x16xf32>
    %99 = tpu.matmul %96, %98, %cst_81 {dimension_numbers = #tpu.dot_dimension_numbers<[1], [0], [0], [1], [0, 0, 1, 1], [], []>} : vector<8x2xf32>, vector<2x16xf32>, vector<8x16xf32> -> vector<8x16xf32>
    %100 = arith.addf %95, %99 : vector<8x16xf32>
    %c7 = arith.constant 7 : index
    %c0_82 = arith.constant 0 : index
    %101 = vector.load %arg17[%c7, %c0_82] : memref<20x2xf32, #tpu.memory_space<vmem>>, vector<8x2xf32>
    %c0_83 = arith.constant 0 : index
    %c3 = arith.constant 3 : index
    %c0_84 = arith.constant 0 : index
    %c0_85 = arith.constant 0 : index
    %102 = vector.load %arg10[%c0_83, %c3, %c0_84, %c0_85] : memref<1x9x2x16xf32, #tpu.memory_space<vmem>>, vector<1x1x2x16xf32>
    %103 = vector.shape_cast %102 : vector<1x1x2x16xf32> to vector<2x16xf32>
    %cst_86 = arith.constant dense<0.000000e+00> : vector<8x16xf32>
    %104 = tpu.matmul %101, %103, %cst_86 {dimension_numbers = #tpu.dot_dimension_numbers<[1], [0], [0], [1], [0, 0, 1, 1], [], []>} : vector<8x2xf32>, vector<2x16xf32>, vector<8x16xf32> -> vector<8x16xf32>
    %105 = arith.addf %100, %104 : vector<8x16xf32>
    %c8_87 = arith.constant 8 : index
    %c0_88 = arith.constant 0 : index
    %106 = vector.load %arg17[%c8_87, %c0_88] : memref<20x2xf32, #tpu.memory_space<vmem>>, vector<8x2xf32>
    %c0_89 = arith.constant 0 : index
    %c4_90 = arith.constant 4 : index
    %c0_91 = arith.constant 0 : index
    %c0_92 = arith.constant 0 : index
    %107 = vector.load %arg10[%c0_89, %c4_90, %c0_91, %c0_92] : memref<1x9x2x16xf32, #tpu.memory_space<vmem>>, vector<1x1x2x16xf32>
    %108 = vector.shape_cast %107 : vector<1x1x2x16xf32> to vector<2x16xf32>
    %cst_93 = arith.constant dense<0.000000e+00> : vector<8x16xf32>
    %109 = tpu.matmul %106, %108, %cst_93 {dimension_numbers = #tpu.dot_dimension_numbers<[1], [0], [0], [1], [0, 0, 1, 1], [], []>} : vector<8x2xf32>, vector<2x16xf32>, vector<8x16xf32> -> vector<8x16xf32>
    %110 = arith.addf %105, %109 : vector<8x16xf32>
    %c9 = arith.constant 9 : index
    %c0_94 = arith.constant 0 : index
    %111 = vector.load %arg17[%c9, %c0_94] : memref<20x2xf32, #tpu.memory_space<vmem>>, vector<8x2xf32>
    %c0_95 = arith.constant 0 : index
    %c5_96 = arith.constant 5 : index
    %c0_97 = arith.constant 0 : index
    %c0_98 = arith.constant 0 : index
    %112 = vector.load %arg10[%c0_95, %c5_96, %c0_97, %c0_98] : memref<1x9x2x16xf32, #tpu.memory_space<vmem>>, vector<1x1x2x16xf32>
    %113 = vector.shape_cast %112 : vector<1x1x2x16xf32> to vector<2x16xf32>
    %cst_99 = arith.constant dense<0.000000e+00> : vector<8x16xf32>
    %114 = tpu.matmul %111, %113, %cst_99 {dimension_numbers = #tpu.dot_dimension_numbers<[1], [0], [0], [1], [0, 0, 1, 1], [], []>} : vector<8x2xf32>, vector<2x16xf32>, vector<8x16xf32> -> vector<8x16xf32>
    %115 = arith.addf %110, %114 : vector<8x16xf32>
    %c10 = arith.constant 10 : index
    %c0_100 = arith.constant 0 : index
    %116 = vector.load %arg17[%c10, %c0_100] : memref<20x2xf32, #tpu.memory_space<vmem>>, vector<8x2xf32>
    %c0_101 = arith.constant 0 : index
    %c6_102 = arith.constant 6 : index
    %c0_103 = arith.constant 0 : index
    %c0_104 = arith.constant 0 : index
    %117 = vector.load %arg10[%c0_101, %c6_102, %c0_103, %c0_104] : memref<1x9x2x16xf32, #tpu.memory_space<vmem>>, vector<1x1x2x16xf32>
    %118 = vector.shape_cast %117 : vector<1x1x2x16xf32> to vector<2x16xf32>
    %cst_105 = arith.constant dense<0.000000e+00> : vector<8x16xf32>
    %119 = tpu.matmul %116, %118, %cst_105 {dimension_numbers = #tpu.dot_dimension_numbers<[1], [0], [0], [1], [0, 0, 1, 1], [], []>} : vector<8x2xf32>, vector<2x16xf32>, vector<8x16xf32> -> vector<8x16xf32>
    %120 = arith.addf %115, %119 : vector<8x16xf32>
    %c11 = arith.constant 11 : index
    %c0_106 = arith.constant 0 : index
    %121 = vector.load %arg17[%c11, %c0_106] : memref<20x2xf32, #tpu.memory_space<vmem>>, vector<8x2xf32>
    %c0_107 = arith.constant 0 : index
    %c7_108 = arith.constant 7 : index
    %c0_109 = arith.constant 0 : index
    %c0_110 = arith.constant 0 : index
    %122 = vector.load %arg10[%c0_107, %c7_108, %c0_109, %c0_110] : memref<1x9x2x16xf32, #tpu.memory_space<vmem>>, vector<1x1x2x16xf32>
    %123 = vector.shape_cast %122 : vector<1x1x2x16xf32> to vector<2x16xf32>
    %cst_111 = arith.constant dense<0.000000e+00> : vector<8x16xf32>
    %124 = tpu.matmul %121, %123, %cst_111 {dimension_numbers = #tpu.dot_dimension_numbers<[1], [0], [0], [1], [0, 0, 1, 1], [], []>} : vector<8x2xf32>, vector<2x16xf32>, vector<8x16xf32> -> vector<8x16xf32>
    %125 = arith.addf %120, %124 : vector<8x16xf32>
    %c12 = arith.constant 12 : index
    %c0_112 = arith.constant 0 : index
    %126 = vector.load %arg17[%c12, %c0_112] : memref<20x2xf32, #tpu.memory_space<vmem>>, vector<8x2xf32>
    %c0_113 = arith.constant 0 : index
    %c8_114 = arith.constant 8 : index
    %c0_115 = arith.constant 0 : index
    %c0_116 = arith.constant 0 : index
    %127 = vector.load %arg10[%c0_113, %c8_114, %c0_115, %c0_116] : memref<1x9x2x16xf32, #tpu.memory_space<vmem>>, vector<1x1x2x16xf32>
    %128 = vector.shape_cast %127 : vector<1x1x2x16xf32> to vector<2x16xf32>
    %cst_117 = arith.constant dense<0.000000e+00> : vector<8x16xf32>
    %129 = tpu.matmul %126, %128, %cst_117 {dimension_numbers = #tpu.dot_dimension_numbers<[1], [0], [0], [1], [0, 0, 1, 1], [], []>} : vector<8x2xf32>, vector<2x16xf32>, vector<8x16xf32> -> vector<8x16xf32>
    %130 = arith.addf %125, %129 : vector<8x16xf32>
    %cst_118 = arith.constant 0.000000e+00 : f32
    %131 = vector.broadcast %cst_118 : f32 to vector<8x16xf32>
    %132 = arith.maximumf %130, %131 : vector<8x16xf32>
    %c0_119 = arith.constant 0 : index
    %c0_120 = arith.constant 0 : index
    %c0_121 = arith.constant 0 : index
    %133 = vector.load %arg12[%c0_119, %c0_120, %c0_121] : memref<1x16x2xf32, #tpu.memory_space<vmem>>, vector<1x16x2xf32>
    %134 = vector.shape_cast %133 : vector<1x16x2xf32> to vector<16x2xf32>
    %cst_122 = arith.constant dense<0.000000e+00> : vector<8x2xf32>
    %135 = tpu.matmul %132, %134, %cst_122 {dimension_numbers = #tpu.dot_dimension_numbers<[1], [0], [0], [1], [0, 0, 1, 1], [], []>} : vector<8x16xf32>, vector<16x2xf32>, vector<8x2xf32> -> vector<8x2xf32>
    %c0_123 = arith.constant 0 : index
    %c0_124 = arith.constant 0 : index
    %c0_125 = arith.constant 0 : index
    %136 = vector.load %arg13[%c0_123, %c0_124, %c0_125] : memref<1x1x2xf32, #tpu.memory_space<vmem>>, vector<1x1x2xf32>
    %137 = vector.shape_cast %136 : vector<1x1x2xf32> to vector<1x2xf32>
    %138 = vector.broadcast %137 : vector<1x2xf32> to vector<8x2xf32>
    %139 = arith.addf %135, %138 : vector<8x2xf32>
    %140 = arith.addf %139, %77 : vector<8x2xf32>
    %c0_126 = arith.constant 0 : index
    %c0_127 = arith.constant 0 : index
    %c0_128 = arith.constant 0 : index
    %141 = vector.load %arg14[%c0_126, %c0_127, %c0_128] : memref<1x1x2xf32, #tpu.memory_space<vmem>>, vector<1x1x2xf32>
    %142 = vector.shape_cast %141 : vector<1x1x2xf32> to vector<1x2xf32>
    %c0_129 = arith.constant 0 : index
    %c0_130 = arith.constant 0 : index
    %c0_131 = arith.constant 0 : index
    %143 = vector.load %arg15[%c0_129, %c0_130, %c0_131] : memref<1x1x2xf32, #tpu.memory_space<vmem>>, vector<1x1x2xf32>
    %144 = vector.shape_cast %143 : vector<1x1x2xf32> to vector<1x2xf32>
    %cst_132 = arith.constant dense<0.000000e+00> : vector<8xf32>
    %145 = vector.multi_reduction <add>, %140, %cst_132 [1] : vector<8x2xf32> to vector<8xf32>
    %146 = vector.shape_cast %145 : vector<8xf32> to vector<8x1xf32>
    %cst_133 = arith.constant 2.000000e+00 : f32
    %147 = vector.broadcast %cst_133 : f32 to vector<8x1xf32>
    %148 = arith.divf %146, %147 : vector<8x1xf32>
    %149 = vector.broadcast %148 : vector<8x1xf32> to vector<8x2xf32>
    %150 = arith.subf %140, %149 : vector<8x2xf32>
    %151 = arith.mulf %150, %150 : vector<8x2xf32>
    %cst_134 = arith.constant dense<0.000000e+00> : vector<8xf32>
    %152 = vector.multi_reduction <add>, %151, %cst_134 [1] : vector<8x2xf32> to vector<8xf32>
    %153 = vector.shape_cast %152 : vector<8xf32> to vector<8x1xf32>
    %cst_135 = arith.constant 2.000000e+00 : f32
    %154 = vector.broadcast %cst_135 : f32 to vector<8x1xf32>
    %155 = arith.divf %153, %154 : vector<8x1xf32>
    %156 = vector.broadcast %148 : vector<8x1xf32> to vector<8x2xf32>
    %157 = arith.subf %140, %156 : vector<8x2xf32>
    %cst_136 = arith.constant 9.99999974E-6 : f32
    %158 = vector.broadcast %cst_136 : f32 to vector<8x1xf32>
    %159 = arith.addf %155, %158 : vector<8x1xf32>
    %160 = math.rsqrt %159 : vector<8x1xf32>
    %161 = vector.broadcast %160 : vector<8x1xf32> to vector<8x2xf32>
    %162 = arith.mulf %157, %161 : vector<8x2xf32>
    %163 = vector.broadcast %142 : vector<1x2xf32> to vector<8x2xf32>
    %164 = arith.mulf %162, %163 : vector<8x2xf32>
    %165 = vector.broadcast %144 : vector<1x2xf32> to vector<8x2xf32>
    %166 = arith.addf %164, %165 : vector<8x2xf32>
    %167 = vector.broadcast %5 : vector<8x1xf32> to vector<8x2xf32>
    %168 = arith.mulf %166, %167 : vector<8x2xf32>
    %c0_137 = arith.constant 0 : index
    %c0_138 = arith.constant 0 : index
    %c0_139 = arith.constant 0 : index
    %169 = vector.load %arg16[%c0_137, %c0_138, %c0_139] : memref<1x8x2xf32, #tpu.memory_space<vmem>>, vector<1x8x2xf32>
    %170 = vector.shape_cast %169 : vector<1x8x2xf32> to vector<8x2xf32>
    %171 = vector.shape_cast %168 : vector<8x2xf32> to vector<1x8x2xf32>
    tpu.vector_store %arg16[%c0_137, %c0_138, %c0_139], %171 {strides = array<i32>} : memref<1x8x2xf32, #tpu.memory_space<vmem>>, vector<1x8x2xf32>,
    return
  }
  func.func @transform_0(%arg0: i32) -> (i32, i32, i32) {
    %c0_i32 = arith.constant 0 : i32
    %c0_i32_0 = arith.constant 0 : i32
    %c0_i32_1 = arith.constant 0 : i32
    return %arg0, %c0_i32, %c0_i32_0 : i32, i32, i32
  }
  func.func @transform_1(%arg0: i32) -> (i32, i32, i32) {
    %c0_i32 = arith.constant 0 : i32
    %c0_i32_0 = arith.constant 0 : i32
    %c0_i32_1 = arith.constant 0 : i32
    return %arg0, %c0_i32, %c0_i32_0 : i32, i32, i32
  }
  func.func @transform_2(%arg0: i32) -> (i32, i32, i32) {
    %c0_i32 = arith.constant 0 : i32
    %c0_i32_0 = arith.constant 0 : i32
    %c0_i32_1 = arith.constant 0 : i32
    return %arg0, %c0_i32, %c0_i32_0 : i32, i32, i32
  }
  func.func @transform_3(%arg0: i32) -> (i32, i32, i32, i32) {
    %c0_i32 = arith.constant 0 : i32
    %c0_i32_0 = arith.constant 0 : i32
    %c0_i32_1 = arith.constant 0 : i32
    %c0_i32_2 = arith.constant 0 : i32
    %c0_i32_3 = arith.constant 0 : i32
    return %c0_i32, %c0_i32_0, %c0_i32_1, %c0_i32_2 : i32, i32, i32, i32
  }
  func.func @transform_4(%arg0: i32) -> (i32, i32, i32, i32) {
    %c0_i32 = arith.constant 0 : i32
    %c0_i32_0 = arith.constant 0 : i32
    %c0_i32_1 = arith.constant 0 : i32
    %c0_i32_2 = arith.constant 0 : i32
    %c0_i32_3 = arith.constant 0 : i32
    return %c0_i32, %c0_i32_0, %c0_i32_1, %c0_i32_2 : i32, i32, i32, i32
  }
  func.func @transform_5(%arg0: i32) -> (i32, i32, i32, i32) {
    %c0_i32 = arith.constant 0 : i32
    %c0_i32_0 = arith.constant 0 : i32
    %c0_i32_1 = arith.constant 0 : i32
    %c0_i32_2 = arith.constant 0 : i32
    %c0_i32_3 = arith.constant 0 : i32
    return %c0_i32, %c0_i32_0, %c0_i32_1, %c0_i32_2 : i32, i32, i32, i32
  }
  func.func @transform_6(%arg0: i32) -> (i32, i32, i32) {
    %c0_i32 = arith.constant 0 : i32
    %c0_i32_0 = arith.constant 0 : i32
    %c0_i32_1 = arith.constant 0 : i32
    %c0_i32_2 = arith.constant 0 : i32
    return %c0_i32, %c0_i32_0, %c0_i32_1 : i32, i32, i32
  }
  func.func @transform_7(%arg0: i32) -> (i32, i32, i32) {
    %c0_i32 = arith.constant 0 : i32
    %c0_i32_0 = arith.constant 0 : i32
    %c0_i32_1 = arith.constant 0 : i32
    %c0_i32_2 = arith.constant 0 : i32
    return %c0_i32, %c0_i32_0, %c0_i32_1 : i32, i32, i32
  }
  func.func @transform_8(%arg0: i32) -> (i32, i32, i32) {
    %c0_i32 = arith.constant 0 : i32
    %c0_i32_0 = arith.constant 0 : i32
    %c0_i32_1 = arith.constant 0 : i32
    %c0_i32_2 = arith.constant 0 : i32
    return %c0_i32, %c0_i32_0, %c0_i32_1 : i32, i32, i32
  }
  func.func @transform_9(%arg0: i32) -> (i32, i32, i32, i32) {
    %c0_i32 = arith.constant 0 : i32
    %c0_i32_0 = arith.constant 0 : i32
    %c0_i32_1 = arith.constant 0 : i32
    %c0_i32_2 = arith.constant 0 : i32
    %c0_i32_3 = arith.constant 0 : i32
    return %c0_i32, %c0_i32_0, %c0_i32_1, %c0_i32_2 : i32, i32, i32, i32
  }
  func.func @transform_10(%arg0: i32) -> (i32, i32, i32) {
    %c0_i32 = arith.constant 0 : i32
    %c0_i32_0 = arith.constant 0 : i32
    %c0_i32_1 = arith.constant 0 : i32
    %c0_i32_2 = arith.constant 0 : i32
    return %c0_i32, %c0_i32_0, %c0_i32_1 : i32, i32, i32
  }
  func.func @transform_11(%arg0: i32) -> (i32, i32, i32) {
    %c0_i32 = arith.constant 0 : i32
    %c0_i32_0 = arith.constant 0 : i32
    %c0_i32_1 = arith.constant 0 : i32
    %c0_i32_2 = arith.constant 0 : i32
    return %c0_i32, %c0_i32_0, %c0_i32_1 : i32, i32, i32
  }
  func.func @transform_12(%arg0: i32) -> (i32, i32, i32) {
    %c0_i32 = arith.constant 0 : i32
    %c0_i32_0 = arith.constant 0 : i32
    %c0_i32_1 = arith.constant 0 : i32
    %c0_i32_2 = arith.constant 0 : i32
    return %c0_i32, %c0_i32_0, %c0_i32_1 : i32, i32, i32
  }
  func.func @transform_13(%arg0: i32) -> (i32, i32, i32) {
    %c0_i32 = arith.constant 0 : i32
    %c0_i32_0 = arith.constant 0 : i32
    %c0_i32_1 = arith.constant 0 : i32
    %c0_i32_2 = arith.constant 0 : i32
    return %c0_i32, %c0_i32_0, %c0_i32_1 : i32, i32, i32
  }
  func.func @transform_14(%arg0: i32) -> (i32, i32, i32) {
    %c0_i32 = arith.constant 0 : i32
    %c0_i32_0 = arith.constant 0 : i32
    %c0_i32_1 = arith.constant 0 : i32
    %c0_i32_2 = arith.constant 0 : i32
    return %c0_i32, %c0_i32_0, %c0_i32_1 : i32, i32, i32
  }
  func.func @transform_15(%arg0: i32) -> (i32, i32, i32) {
    %c0_i32 = arith.constant 0 : i32
    %c0_i32_0 = arith.constant 0 : i32
    %c0_i32_1 = arith.constant 0 : i32
    return %arg0, %c0_i32, %c0_i32_0 : i32, i32, i32
  }
}

</mosaic_0001>

<llo_original>
// kernel: tpu_custom_call.1
$region0: #{tpu_custom_call.1}
  #allocation0 [shape = 'u32[]', space=smem, size = 0x4, offset = 0x4, fixed_abs, tag = 'smem constant byte address 0x4 - core index']
  #allocation1 [shape = 'u32[144,128]{1,0:T(1,128)}', space=vmem, size = 0x12000, scoped, tag = 'internal scratch']
  #allocation2 [shape = 'f32[20,2]{1,0:T(8,128)}', space=vmem, size = 0x3000, scoped, tag = 'scratch operand']
  %s0 = inlined_call_operand.vmem [shape: f32[2,8,2], index: 0, kind: input, shape index: {}]
  %s1 = inlined_call_operand.vmem [shape: f32[2,1,8], index: 1, kind: input, shape index: {}]
  %s2 = inlined_call_operand.vmem [shape: f32[2,8,1], index: 2, kind: input, shape index: {}]
  %s3 = inlined_call_operand.vmem [shape: f32[1,3,2,1], index: 3, kind: input, shape index: {}]
  %s4 = inlined_call_operand.vmem [shape: f32[1,3,1,1], index: 4, kind: input, shape index: {}]
  %s5 = inlined_call_operand.vmem [shape: f32[1,1,1,2], index: 5, kind: input, shape index: {}]
  %s6 = inlined_call_operand.vmem [shape: f32[1,1,2], index: 6, kind: input, shape index: {}]
  %s7 = inlined_call_operand.vmem [shape: f32[1,1,2], index: 7, kind: input, shape index: {}]
  %s8 = inlined_call_operand.vmem [shape: f32[1,1,2], index: 8, kind: input, shape index: {}]
  %s9 = inlined_call_operand.vmem [shape: f32[1,9,2,16], index: 9, kind: input, shape index: {}]
  %s10 = inlined_call_operand.vmem [shape: f32[1,1,16], index: 10, kind: input, shape index: {}]
  %s11 = inlined_call_operand.vmem [shape: f32[1,16,2], index: 11, kind: input, shape index: {}]
  %s12 = inlined_call_operand.vmem [shape: f32[1,1,2], index: 12, kind: input, shape index: {}]
  %s13 = inlined_call_operand.vmem [shape: f32[1,1,2], index: 13, kind: input, shape index: {}]
  %s14 = inlined_call_operand.vmem [shape: f32[1,1,2], index: 14, kind: input, shape index: {}]
  %s15 = inlined_call_operand.vmem [shape: f32[2,8,2], index: 15, kind: output, shape index: {}]
  %s16 = sld [smem:[#allocation0]]
  $region93: #{tpu_custom_call.1} parent=0
    _
  %s18 = ssub.s32 1, %s16
  %s19 = scalar_select 0, %s18, %s16
  loop: start=0, step=1, limit=4
  $region2: #{tpu_custom_call.1} parent=0 // loop_pre_header
    _
  $region3: #{tpu_custom_call.1} parent=0 // loop_header
    %s21 = sphi 0, %s25
    %p22 = scmp.ge.s32.totalorder %s21, 4
    %s31 = sphi 0, %s33
    %s34 = sphi 0, %s31
    %s35 = sphi 0, %s34
    %s51 = sphi 0, %s35
    %s57 = sphi 0, %s59
    %s60 = sphi 0, %s57
    %s61 = sphi 0, %s60
    %s77 = sphi 0, %s61
    %s83 = sphi 0, %s85
    %s86 = sphi 0, %s83
    %s87 = sphi 0, %s86
    %s103 = sphi 0, %s87
    %s107 = sphi 0, %s107
    %s109 = sphi 0, %s107
    %s110 = sphi 0, %s109
    %s124 = sphi 0, %s110
    %s128 = sphi 0, %s128
    %s130 = sphi 0, %s128
    %s131 = sphi 0, %s130
    %s145 = sphi 0, %s131
    %s149 = sphi 0, %s149
    %s151 = sphi 0, %s149
    %s152 = sphi 0, %s151
    %s166 = sphi 0, %s152
    %s170 = sphi 0, %s170
    %s172 = sphi 0, %s170
    %s173 = sphi 0, %s172
    %s187 = sphi 0, %s173
    %s191 = sphi 0, %s191
    %s193 = sphi 0, %s191
    %s194 = sphi 0, %s193
    %s208 = sphi 0, %s194
    %s212 = sphi 0, %s212
    %s214 = sphi 0, %s212
    %s215 = sphi 0, %s214
    %s229 = sphi 0, %s215
    %s233 = sphi 0, %s233
    %s235 = sphi 0, %s233
    %s236 = sphi 0, %s235
    %s250 = sphi 0, %s236
    %s254 = sphi 0, %s254
    %s256 = sphi 0, %s254
    %s257 = sphi 0, %s256
    %s271 = sphi 0, %s257
    %s275 = sphi 0, %s275
    %s277 = sphi 0, %s275
    %s278 = sphi 0, %s277
    %s292 = sphi 0, %s278
    %s296 = sphi 0, %s296
    %s298 = sphi 0, %s296
    %s299 = sphi 0, %s298
    %s313 = sphi 0, %s299
    %s317 = sphi 0, %s317
    %s319 = sphi 0, %s317
    %s320 = sphi 0, %s319
    %s334 = sphi 0, %s320
    %s338 = sphi 0, %s338
    %s340 = sphi 0, %s338
    %s341 = sphi 0, %s340
    %s355 = sphi 0, %s341
    %s361 = sphi 0, %s363
    %s364 = sphi 0, %s361
    %s365 = sphi 0, %s364
    %s381 = sphi 0, %s365
  $region4: #{tpu_custom_call.1} parent=0 // loop_header_branch
    %24 = sbr.rel (%p22) target = $region8
  $region5: #{tpu_custom_call.1} parent=0 // loop_body
    %s26 = ssub.s32 %s21, 1
    %s27 = ssub.s32 %s21, 2
    %s28 = sadd.s32 %s21, 1
    %s29 = ssub.s32 %s21, %s28
    %p30 = scmp.eq.s32.totalorder %s29, 0
    %s32 = sadd.s32 %s31, 1
    %s33 = scalar_select %p30, %s31, %s32
    %p36 = pneg %p30
    %p37 = scmp.eq.s32.totalorder %s21, 1
    %p38 = por %p36, %p37
    %p39 = scmp.ne.s32.totalorder %s31, %s34
    %p40 = scmp.eq.s32.totalorder %s21, 0
    %p41 = por %p39, %p40
    %p42 = scmp.ne.s32.totalorder %s31, %s34
    %p43 = scmp.eq.s32.totalorder %s26, 1
    %p44 = por %p42, %p43
    %p45 = scmp.ne.s32.totalorder %s34, %s35
    %p46 = scmp.eq.s32.totalorder %s26, 0
    %p47 = por %p45, %p46
    %p48 = scmp.ne.s32.totalorder %s34, %s35
    %p49 = scmp.eq.s32.totalorder %s27, 1
    %p50 = por %p48, %p49
    %p52 = scmp.ne.s32.totalorder %s35, %s51
    %p53 = scmp.eq.s32.totalorder %s27, 0
    %p54 = por %p52, %p53
    %s55 = ssub.s32 %s21, %s28
    %p56 = scmp.eq.s32.totalorder %s55, 0
    %s58 = sadd.s32 %s57, 1
    %s59 = scalar_select %p56, %s57, %s58
    %p62 = pneg %p56
    %p63 = scmp.eq.s32.totalorder %s21, 1
    %p64 = por %p62, %p63
    %p65 = scmp.ne.s32.totalorder %s57, %s60
    %p66 = scmp.eq.s32.totalorder %s21, 0
    %p67 = por %p65, %p66
    %p68 = scmp.ne.s32.totalorder %s57, %s60
    %p69 = scmp.eq.s32.totalorder %s26, 1
    %p70 = por %p68, %p69
    %p71 = scmp.ne.s32.totalorder %s60, %s61
    %p72 = scmp.eq.s32.totalorder %s26, 0
    %p73 = por %p71, %p72
    %p74 = scmp.ne.s32.totalorder %s60, %s61
    %p75 = scmp.eq.s32.totalorder %s27, 1
    %p76 = por %p74, %p75
    %p78 = scmp.ne.s32.totalorder %s61, %s77
    %p79 = scmp.eq.s32.totalorder %s27, 0
    %p80 = por %p78, %p79
    %s81 = ssub.s32 %s21, %s28
    %p82 = scmp.eq.s32.totalorder %s81, 0
    %s84 = sadd.s32 %s83, 1
    %s85 = scalar_select %p82, %s83, %s84
    %p88 = pneg %p82
    %p89 = scmp.eq.s32.totalorder %s21, 1
    %p90 = por %p88, %p89
    %p91 = scmp.ne.s32.totalorder %s83, %s86
    %p92 = scmp.eq.s32.totalorder %s21, 0
    %p93 = por %p91, %p92
    %p94 = scmp.ne.s32.totalorder %s83, %s86
    %p95 = scmp.eq.s32.totalorder %s26, 1
    %p96 = por %p94, %p95
    %p97 = scmp.ne.s32.totalorder %s86, %s87
    %p98 = scmp.eq.s32.totalorder %s26, 0
    %p99 = por %p97, %p98
    %p100 = scmp.ne.s32.totalorder %s86, %s87
    %p101 = scmp.eq.s32.totalorder %s27, 1
    %p102 = por %p100, %p101
    %p104 = scmp.ne.s32.totalorder %s87, %s103
    %p105 = scmp.eq.s32.totalorder %s27, 0
    %p106 = por %p104, %p105
    %s108 = sadd.s32 %s107, 1
    %p111 = scmp.eq.s32.totalorder %s21, 1
    %p112 = scmp.ne.s32.totalorder %s107, %s109
    %p113 = scmp.eq.s32.totalorder %s21, 0
    %p114 = por %p112, %p113
    %p115 = scmp.ne.s32.totalorder %s107, %s109
    %p116 = scmp.eq.s32.totalorder %s26, 1
    %p117 = por %p115, %p116
    %p118 = scmp.ne.s32.totalorder %s109, %s110
    %p119 = scmp.eq.s32.totalorder %s26, 0
    %p120 = por %p118, %p119
    %p121 = scmp.ne.s32.totalorder %s109, %s110
    %p122 = scmp.eq.s32.totalorder %s27, 1
    %p123 = por %p121, %p122
    %p125 = scmp.ne.s32.totalorder %s110, %s124
    %p126 = scmp.eq.s32.totalorder %s27, 0
    %p127 = por %p125, %p126
    %s129 = sadd.s32 %s128, 1
    %p132 = scmp.eq.s32.totalorder %s21, 1
    %p133 = scmp.ne.s32.totalorder %s128, %s130
    %p134 = scmp.eq.s32.totalorder %s21, 0
    %p135 = por %p133, %p134
    %p136 = scmp.ne.s32.totalorder %s128, %s130
    %p137 = scmp.eq.s32.totalorder %s26, 1
    %p138 = por %p136, %p137
    %p139 = scmp.ne.s32.totalorder %s130, %s131
    %p140 = scmp.eq.s32.totalorder %s26, 0
    %p141 = por %p139, %p140
    %p142 = scmp.ne.s32.totalorder %s130, %s131
    %p143 = scmp.eq.s32.totalorder %s27, 1
    %p144 = por %p142, %p143
    %p146 = scmp.ne.s32.totalorder %s131, %s145
    %p147 = scmp.eq.s32.totalorder %s27, 0
    %p148 = por %p146, %p147
    %s150 = sadd.s32 %s149, 1
    %p153 = scmp.eq.s32.totalorder %s21, 1
    %p154 = scmp.ne.s32.totalorder %s149, %s151
    %p155 = scmp.eq.s32.totalorder %s21, 0
    %p156 = por %p154, %p155
    %p157 = scmp.ne.s32.totalorder %s149, %s151
    %p158 = scmp.eq.s32.totalorder %s26, 1
    %p159 = por %p157, %p158
    %p160 = scmp.ne.s32.totalorder %s151, %s152
    %p161 = scmp.eq.s32.totalorder %s26, 0
    %p162 = por %p160, %p161
    %p163 = scmp.ne.s32.totalorder %s151, %s152
    %p164 = scmp.eq.s32.totalorder %s27, 1
    %p165 = por %p163, %p164
    %p167 = scmp.ne.s32.totalorder %s152, %s166
    %p168 = scmp.eq.s32.totalorder %s27, 0
    %p169 = por %p167, %p168
    %s171 = sadd.s32 %s170, 1
    %p174 = scmp.eq.s32.totalorder %s21, 1
    %p175 = scmp.ne.s32.totalorder %s170, %s172
    %p176 = scmp.eq.s32.totalorder %s21, 0
    %p177 = por %p175, %p176
    %p178 = scmp.ne.s32.totalorder %s170, %s172
    %p179 = scmp.eq.s32.totalorder %s26, 1
    %p180 = por %p178, %p179
    %p181 = scmp.ne.s32.totalorder %s172, %s173
    %p182 = scmp.eq.s32.totalorder %s26, 0
    %p183 = por %p181, %p182
    %p184 = scmp.ne.s32.totalorder %s172, %s173
    %p185 = scmp.eq.s32.totalorder %s27, 1
    %p186 = por %p184, %p185
    %p188 = scmp.ne.s32.totalorder %s173, %s187
    %p189 = scmp.eq.s32.totalorder %s27, 0
    %p190 = por %p188, %p189
    %s192 = sadd.s32 %s191, 1
    %p195 = scmp.eq.s32.totalorder %s21, 1
    %p196 = scmp.ne.s32.totalorder %s191, %s193
    %p197 = scmp.eq.s32.totalorder %s21, 0
    %p198 = por %p196, %p197
    %p199 = scmp.ne.s32.totalorder %s191, %s193
    %p200 = scmp.eq.s32.totalorder %s26, 1
    %p201 = por %p199, %p200
    %p202 = scmp.ne.s32.totalorder %s193, %s194
    %p203 = scmp.eq.s32.totalorder %s26, 0
    %p204 = por %p202, %p203
    %p205 = scmp.ne.s32.totalorder %s193, %s194
    %p206 = scmp.eq.s32.totalorder %s27, 1
    %p207 = por %p205, %p206
    %p209 = scmp.ne.s32.totalorder %s194, %s208
    %p210 = scmp.eq.s32.totalorder %s27, 0
    %p211 = por %p209, %p210
    %s213 = sadd.s32 %s212, 1
    %p216 = scmp.eq.s32.totalorder %s21, 1
    %p217 = scmp.ne.s32.totalorder %s212, %s214
    %p218 = scmp.eq.s32.totalorder %s21, 0
    %p219 = por %p217, %p218
    %p220 = scmp.ne.s32.totalorder %s212, %s214
    %p221 = scmp.eq.s32.totalorder %s26, 1
    %p222 = por %p220, %p221
    %p223 = scmp.ne.s32.totalorder %s214, %s215
    %p224 = scmp.eq.s32.totalorder %s26, 0
    %p225 = por %p223, %p224
    %p226 = scmp.ne.s32.totalorder %s214, %s215
    %p227 = scmp.eq.s32.totalorder %s27, 1
    %p228 = por %p226, %p227
    %p230 = scmp.ne.s32.totalorder %s215, %s229
    %p231 = scmp.eq.s32.totalorder %s27, 0
    %p232 = por %p230, %p231
    %s234 = sadd.s32 %s233, 1
    %p237 = scmp.eq.s32.totalorder %s21, 1
    %p238 = scmp.ne.s32.totalorder %s233, %s235
    %p239 = scmp.eq.s32.totalorder %s21, 0
    %p240 = por %p238, %p239
    %p241 = scmp.ne.s32.totalorder %s233, %s235
    %p242 = scmp.eq.s32.totalorder %s26, 1
    %p243 = por %p241, %p242
    %p244 = scmp.ne.s32.totalorder %s235, %s236
    %p245 = scmp.eq.s32.totalorder %s26, 0
    %p246 = por %p244, %p245
    %p247 = scmp.ne.s32.totalorder %s235, %s236
    %p248 = scmp.eq.s32.totalorder %s27, 1
    %p249 = por %p247, %p248
    %p251 = scmp.ne.s32.totalorder %s236, %s250
    %p252 = scmp.eq.s32.totalorder %s27, 0
    %p253 = por %p251, %p252
    %s255 = sadd.s32 %s254, 1
    %p258 = scmp.eq.s32.totalorder %s21, 1
    %p259 = scmp.ne.s32.totalorder %s254, %s256
    %p260 = scmp.eq.s32.totalorder %s21, 0
    %p261 = por %p259, %p260
    %p262 = scmp.ne.s32.totalorder %s254, %s256
    %p263 = scmp.eq.s32.totalorder %s26, 1
    %p264 = por %p262, %p263
    %p265 = scmp.ne.s32.totalorder %s256, %s257
    %p266 = scmp.eq.s32.totalorder %s26, 0
    %p267 = por %p265, %p266
    %p268 = scmp.ne.s32.totalorder %s256, %s257
    %p269 = scmp.eq.s32.totalorder %s27, 1
    %p270 = por %p268, %p269
    %p272 = scmp.ne.s32.totalorder %s257, %s271
    %p273 = scmp.eq.s32.totalorder %s27, 0
    %p274 = por %p272, %p273
    %s276 = sadd.s32 %s275, 1
    %p279 = scmp.eq.s32.totalorder %s21, 1
    %p280 = scmp.ne.s32.totalorder %s275, %s277
    %p281 = scmp.eq.s32.totalorder %s21, 0
    %p282 = por %p280, %p281
    %p283 = scmp.ne.s32.totalorder %s275, %s277
    %p284 = scmp.eq.s32.totalorder %s26, 1
    %p285 = por %p283, %p284
    %p286 = scmp.ne.s32.totalorder %s277, %s278
    %p287 = scmp.eq.s32.totalorder %s26, 0
    %p288 = por %p286, %p287
    %p289 = scmp.ne.s32.totalorder %s277, %s278
    %p290 = scmp.eq.s32.totalorder %s27, 1
    %p291 = por %p289, %p290
    %p293 = scmp.ne.s32.totalorder %s278, %s292
    %p294 = scmp.eq.s32.totalorder %s27, 0
    %p295 = por %p293, %p294
    %s297 = sadd.s32 %s296, 1
    %p300 = scmp.eq.s32.totalorder %s21, 1
    %p301 = scmp.ne.s32.totalorder %s296, %s298
    %p302 = scmp.eq.s32.totalorder %s21, 0
    %p303 = por %p301, %p302
    %p304 = scmp.ne.s32.totalorder %s296, %s298
    %p305 = scmp.eq.s32.totalorder %s26, 1
    %p306 = por %p304, %p305
    %p307 = scmp.ne.s32.totalorder %s298, %s299
    %p308 = scmp.eq.s32.totalorder %s26, 0
    %p309 = por %p307, %p308
    %p310 = scmp.ne.s32.totalorder %s298, %s299
    %p311 = scmp.eq.s32.totalorder %s27, 1
    %p312 = por %p310, %p311
    %p314 = scmp.ne.s32.totalorder %s299, %s313
    %p315 = scmp.eq.s32.totalorder %s27, 0
    %p316 = por %p314, %p315
    %s318 = sadd.s32 %s317, 1
    %p321 = scmp.eq.s32.totalorder %s21, 1
    %p322 = scmp.ne.s32.totalorder %s317, %s319
    %p323 = scmp.eq.s32.totalorder %s21, 0
    %p324 = por %p322, %p323
    %p325 = scmp.ne.s32.totalorder %s317, %s319
    %p326 = scmp.eq.s32.totalorder %s26, 1
    %p327 = por %p325, %p326
    %p328 = scmp.ne.s32.totalorder %s319, %s320
    %p329 = scmp.eq.s32.totalorder %s26, 0
    %p330 = por %p328, %p329
    %p331 = scmp.ne.s32.totalorder %s319, %s320
    %p332 = scmp.eq.s32.totalorder %s27, 1
    %p333 = por %p331, %p332
    %p335 = scmp.ne.s32.totalorder %s320, %s334
    %p336 = scmp.eq.s32.totalorder %s27, 0
    %p337 = por %p335, %p336
    %s339 = sadd.s32 %s338, 1
    %p342 = scmp.eq.s32.totalorder %s21, 1
    %p343 = scmp.ne.s32.totalorder %s338, %s340
    %p344 = scmp.eq.s32.totalorder %s21, 0
    %p345 = por %p343, %p344
    %p346 = scmp.ne.s32.totalorder %s338, %s340
    %p347 = scmp.eq.s32.totalorder %s26, 1
    %p348 = por %p346, %p347
    %p349 = scmp.ne.s32.totalorder %s340, %s341
    %p350 = scmp.eq.s32.totalorder %s26, 0
    %p351 = por %p349, %p350
    %p352 = scmp.ne.s32.totalorder %s340, %s341
    %p353 = scmp.eq.s32.totalorder %s27, 1
    %p354 = por %p352, %p353
    %p356 = scmp.ne.s32.totalorder %s341, %s355
    %p357 = scmp.eq.s32.totalorder %s27, 0
    %p358 = por %p356, %p357
    %s359 = ssub.s32 %s21, %s28
    %p360 = scmp.eq.s32.totalorder %s359, 0
    %s362 = sadd.s32 %s361, 1
    %s363 = scalar_select %p360, %s361, %s362
    %p366 = pneg %p360
    %p367 = scmp.eq.s32.totalorder %s21, 1
    %p368 = por %p366, %p367
    %p369 = scmp.ne.s32.totalorder %s361, %s364
    %p370 = scmp.eq.s32.totalorder %s21, 0
    %p371 = por %p369, %p370
    %p372 = scmp.ne.s32.totalorder %s361, %s364
    %p373 = scmp.eq.s32.totalorder %s26, 1
    %p374 = por %p372, %p373
    %p375 = scmp.ne.s32.totalorder %s364, %s365
    %p376 = scmp.eq.s32.totalorder %s26, 0
    %p377 = por %p375, %p376
    %p378 = scmp.ne.s32.totalorder %s364, %s365
    %p379 = scmp.eq.s32.totalorder %s27, 1
    %p380 = por %p378, %p379
    %p382 = scmp.ne.s32.totalorder %s365, %s381
    %p383 = scmp.eq.s32.totalorder %s27, 0
    %p384 = por %p382, %p383
    %p385 = scmp.le.s32.totalorder 1, %s21
    %p386 = scmp.lt.s32.totalorder %s21, 3
    %p387 = pnand %p385, %p386
    %p388 = pneg %p387
    // Predicated region
    $region9: #{tpu_custom_call.1} parent=5 // pred_check
      _
    $region10: #{tpu_custom_call.1} parent=5 // pred_check_branch
      %390 = sbr.rel (%p387) target = $region12
    $region11: #{tpu_custom_call.1} parent=5 // pred_region
      %s391 = ssub.s32 %s21, 1
      // Predicated region
      $region13: #{tpu_custom_call.1} parent=11 // pred_check
        %p392 = pneg %p120
      $region14: #{tpu_custom_call.1} parent=11 // pred_check_branch
        %394 = sbr.rel (%p392) target = $region16
      $region15: #{tpu_custom_call.1} parent=11 // pred_region
        _
      $region16: #{tpu_custom_call.1} parent=11 // pred_fallthru
        _
      // Predicated region
      $region17: #{tpu_custom_call.1} parent=11 // pred_check
        %p395 = pneg %p141
      $region18: #{tpu_custom_call.1} parent=11 // pred_check_branch
        %397 = sbr.rel (%p395) target = $region20
      $region19: #{tpu_custom_call.1} parent=11 // pred_region
        _
      $region20: #{tpu_custom_call.1} parent=11 // pred_fallthru
        _
      // Predicated region
      $region21: #{tpu_custom_call.1} parent=11 // pred_check
        %p398 = pneg %p162
      $region22: #{tpu_custom_call.1} parent=11 // pred_check_branch
        %400 = sbr.rel (%p398) target = $region24
      $region23: #{tpu_custom_call.1} parent=11 // pred_region
        _
      $region24: #{tpu_custom_call.1} parent=11 // pred_fallthru
        _
      // Predicated region
      $region25: #{tpu_custom_call.1} parent=11 // pred_check
        %p401 = pneg %p183
      $region26: #{tpu_custom_call.1} parent=11 // pred_check_branch
        %403 = sbr.rel (%p401) target = $region28
      $region27: #{tpu_custom_call.1} parent=11 // pred_region
        _
      $region28: #{tpu_custom_call.1} parent=11 // pred_fallthru
        _
      // Predicated region
      $region29: #{tpu_custom_call.1} parent=11 // pred_check
        %p404 = pneg %p204
      $region30: #{tpu_custom_call.1} parent=11 // pred_check_branch
        %406 = sbr.rel (%p404) target = $region32
      $region31: #{tpu_custom_call.1} parent=11 // pred_region
        _
      $region32: #{tpu_custom_call.1} parent=11 // pred_fallthru
        _
      // Predicated region
      $region33: #{tpu_custom_call.1} parent=11 // pred_check
        %p407 = pneg %p225
      $region34: #{tpu_custom_call.1} parent=11 // pred_check_branch
        %409 = sbr.rel (%p407) target = $region36
      $region35: #{tpu_custom_call.1} parent=11 // pred_region
        _
      $region36: #{tpu_custom_call.1} parent=11 // pred_fallthru
        _
      // Predicated region
      $region37: #{tpu_custom_call.1} parent=11 // pred_check
        %p410 = pneg %p246
      $region38: #{tpu_custom_call.1} parent=11 // pred_check_branch
        %412 = sbr.rel (%p410) target = $region40
      $region39: #{tpu_custom_call.1} parent=11 // pred_region
        _
      $region40: #{tpu_custom_call.1} parent=11 // pred_fallthru
        _
      // Predicated region
      $region41: #{tpu_custom_call.1} parent=11 // pred_check
        %p413 = pneg %p267
      $region42: #{tpu_custom_call.1} parent=11 // pred_check_branch
        %415 = sbr.rel (%p413) target = $region44
      $region43: #{tpu_custom_call.1} parent=11 // pred_region
        _
      $region44: #{tpu_custom_call.1} parent=11 // pred_fallthru
        _
      // Predicated region
      $region45: #{tpu_custom_call.1} parent=11 // pred_check
        %p416 = pneg %p288
      $region46: #{tpu_custom_call.1} parent=11 // pred_check_branch
        %418 = sbr.rel (%p416) target = $region48
      $region47: #{tpu_custom_call.1} parent=11 // pred_region
        _
      $region48: #{tpu_custom_call.1} parent=11 // pred_fallthru
        _
      // Predicated region
      $region49: #{tpu_custom_call.1} parent=11 // pred_check
        %p419 = pneg %p309
      $region50: #{tpu_custom_call.1} parent=11 // pred_check_branch
        %421 = sbr.rel (%p419) target = $region52
      $region51: #{tpu_custom_call.1} parent=11 // pred_region
        _
      $region52: #{tpu_custom_call.1} parent=11 // pred_fallthru
        _
      // Predicated region
      $region53: #{tpu_custom_call.1} parent=11 // pred_check
        %p422 = pneg %p330
      $region54: #{tpu_custom_call.1} parent=11 // pred_check_branch
        %424 = sbr.rel (%p422) target = $region56
      $region55: #{tpu_custom_call.1} parent=11 // pred_region
        _
      $region56: #{tpu_custom_call.1} parent=11 // pred_fallthru
        _
      // Predicated region
      $region57: #{tpu_custom_call.1} parent=11 // pred_check
        %p425 = pneg %p351
      $region58: #{tpu_custom_call.1} parent=11 // pred_check_branch
        %427 = sbr.rel (%p425) target = $region60
      $region59: #{tpu_custom_call.1} parent=11 // pred_region
        _
      $region60: #{tpu_custom_call.1} parent=11 // pred_fallthru
        _
    $region12: #{tpu_custom_call.1} parent=5 // pred_fallthru
      _
    %p428 = scmp.lt.s32.totalorder %s21, 2
    // Predicated region
    $region61: #{tpu_custom_call.1} parent=5 // pred_check
      %p429 = pneg %p428
    $region62: #{tpu_custom_call.1} parent=5 // pred_check_branch
      %431 = sbr.rel (%p429) target = $region64
    $region63: #{tpu_custom_call.1} parent=5 // pred_region
      // Predicated region
      $region65: #{tpu_custom_call.1} parent=63 // pred_check
        %p432 = pneg %p41
      $region66: #{tpu_custom_call.1} parent=63 // pred_check_branch
        %434 = sbr.rel (%p432) target = $region68
      $region67: #{tpu_custom_call.1} parent=63 // pred_region
        %p435 = scmp.lt.s32.totalorder %s21, 1
        %s436 = scalar_select %p435, %s21, 1
        %s437 = smul.addr %s436, 8
        %s438 = scalar_lea.vmem %s0, %s437
      $region68: #{tpu_custom_call.1} parent=63 // pred_fallthru
        _
      // Predicated region
      $region69: #{tpu_custom_call.1} parent=63 // pred_check
        %p439 = pneg %p67
      $region70: #{tpu_custom_call.1} parent=63 // pred_check_branch
        %441 = sbr.rel (%p439) target = $region72
      $region71: #{tpu_custom_call.1} parent=63 // pred_region
        %p442 = scmp.lt.s32.totalorder %s21, 1
        %s443 = scalar_select %p442, %s21, 1
        %s444 = scalar_lea.vmem %s1, %s443
      $region72: #{tpu_custom_call.1} parent=63 // pred_fallthru
        _
      // Predicated region
      $region73: #{tpu_custom_call.1} parent=63 // pred_check
        %p445 = pneg %p93
      $region74: #{tpu_custom_call.1} parent=63 // pred_check_branch
        %447 = sbr.rel (%p445) target = $region76
      $region75: #{tpu_custom_call.1} parent=63 // pred_region
        %p448 = scmp.lt.s32.totalorder %s21, 1
        %s449 = scalar_select %p448, %s21, 1
        %s450 = smul.addr %s449, 8
        %s451 = scalar_lea.vmem %s2, %s450
      $region76: #{tpu_custom_call.1} parent=63 // pred_fallthru
        _
    $region64: #{tpu_custom_call.1} parent=5 // pred_fallthru
      _
    %p452 = scmp.le.s32.totalorder 1, %s21
    %p453 = scmp.lt.s32.totalorder %s21, 3
    %p454 = pnand %p452, %p453
    %p455 = pneg %p454
    // Predicated region
    $region77: #{tpu_custom_call.1} parent=5 // pred_check
      _
    $region78: #{tpu_custom_call.1} parent=5 // pred_check_branch
      %457 = sbr.rel (%p454) target = $region80
    $region79: #{tpu_custom_call.1} parent=5 // pred_region
      %s458 = ssub.s32 %s21, 1
      %p459 = scmp.lt.s32.totalorder %s26, 1
      %s460 = scalar_select %p459, %s26, 1
      %s461 = smul.addr %s460, 8
      %s462 = scalar_lea.vmem %s0, %s461
      %p463 = pneg %p47
      %p464 = pneg %p44
      %p465 = scmp.lt.s32.totalorder %s26, 1
      %s466 = scalar_select %p465, %s26, 1
      %s467 = scalar_lea.vmem %s1, %s466
      %p468 = pneg %p73
      %p469 = pneg %p70
      %p470 = scmp.lt.s32.totalorder %s26, 1
      %s471 = scalar_select %p470, %s26, 1
      %s472 = smul.addr %s471, 8
      %s473 = scalar_lea.vmem %s2, %s472
      %p474 = pneg %p99
      %p475 = pneg %p96
      %p476 = pneg %p120
      %p477 = pneg %p117
      %p478 = pneg %p141
      %p479 = pneg %p138
      %p480 = pneg %p162
      %p481 = pneg %p159
      %p482 = pneg %p183
      %p483 = pneg %p180
      %p484 = pneg %p204
      %p485 = pneg %p201
      %p486 = pneg %p225
      %p487 = pneg %p222
      %p488 = pneg %p246
      %p489 = pneg %p243
      %p490 = pneg %p267
      %p491 = pneg %p264
      %p492 = pneg %p288
      %p493 = pneg %p285
      %p494 = pneg %p309
      %p495 = pneg %p306
      %p496 = pneg %p330
      %p497 = pneg %p327
      %p498 = pneg %p351
      %p499 = pneg %p348
      %p500 = pneg %p377
      %p501 = pneg %p374
      %p502 = scmp.lt.s32.totalorder %s26, 1
      %s503 = scalar_select %p502, %s26, 1
      %s504 = smul.addr %s503, 8
      %s505 = scalar_lea.vmem %s15, %s504
      %p506 = scmp.lt.s32.totalorder %s26, 1
      %s507 = scalar_select %p506, %s26, 1
      %s508 = smul.addr %s507, 8
      %s509 = scalar_lea.vmem %s0, %s508
      %p510 = scmp.lt.s32.totalorder %s26, 1
      %s511 = scalar_select %p510, %s26, 1
      %s512 = scalar_lea.vmem %s1, %s511
      %p513 = scmp.lt.s32.totalorder %s26, 1
      %s514 = scalar_select %p513, %s26, 1
      %s515 = smul.addr %s514, 8
      %s516 = scalar_lea.vmem %s2, %s515
      %p517 = scmp.lt.s32.totalorder %s26, 1
      %s518 = scalar_select %p517, %s26, 1
      %s519 = smul.addr %s518, 8
      %s520 = scalar_lea.vmem %s15, %s519
      %v521 = vld [vmem:[%s509] sm:$0xff]
      %v522 = vld [vmem:[%s512] sm:$0x1]
      %v523 = vld [vmem:[%s516] sm:$0xff]
      %v524 = vld [vmem:[%s3] sm:$0x3]
      %v525 = vld [vmem:[%s4] sm:$0x1]
      %v527 = vlaneseq
      %v528 = vshrl.u32 %v527, 7
      %v529 = vsub.s32 0, %v528
      %v530 = vrot.slane %v525, %v529
      %vm532 = vcmask 15360
      %v534 = vsel %vm532, %v521, 0
      %vm536 = vcmask 1041408
      %v538 = vsel %vm536, %v524, 0
      %540 = vmatprep.subr.mxu0 0.0
      %541 = vmatpush1.msra.mxu0 %v538
      %542 = vmatprep.subr.mxu0 0.0
      %543 = vmatpush1.msra.mxu0 0.0
      %544 = vmatprep.subr.mxu0 0.0
      %545 = vmatpush1.msra.mxu0 0.0
      %546 = vmatprep.subr.mxu0 0.0
      %547 = vmatpush1.msra.mxu0 0.0
      %548 = vmatprep.subr.mxu0 0.0
      %549 = vmatpush1.msra.mxu0 0.0
      %550 = vmatprep.subr.mxu0 0.0
      %551 = vmatpush1.msra.mxu0 0.0
      %552 = vmatprep.subr.mxu0 0.0
      %553 = vmatpush1.msra.mxu0 0.0
      %554 = vmatprep.subr.mxu0 0.0
      %555 = vmatpush1.msra.mxu0 0.0
      %556 = vmatprep.subr.mxu0 0.0
      %557 = vmatpush1.msra.mxu0 0.0
      %558 = vmatprep.subr.mxu0 0.0
      %559 = vmatpush1.msra.mxu0 0.0
      %560 = vmatprep.subr.mxu0 0.0
      %561 = vmatpush1.msra.mxu0 0.0
      %562 = vmatprep.subr.mxu0 0.0
      %563 = vmatpush1.msra.mxu0 0.0
      %564 = vmatprep.subr.mxu0 0.0
      %565 = vmatpush1.msra.mxu0 0.0
      %566 = vmatprep.subr.mxu0 0.0
      %567 = vmatpush1.msra.mxu0 0.0
      %568 = vmatprep.subr.mxu0 0.0
      %569 = vmatpush1.msra.mxu0 0.0
      %570 = vmatprep.subr.mxu0 0.0
      %571 = vmatpush1.msra.mxu0 0.0
      %572 = vmatprep.subr.mxu0 0.0
      %573 = vmatpush1.msra.mxu0 0.0
      %574 = vmatprep.subr.mxu0 0.0
      %575 = vmatpush1.msra.mxu0 0.0
      %576 = vmatprep.subr.mxu0 0.0
      %577 = vmatpush1.msra.mxu0 0.0
      %578 = vmatprep.subr.mxu0 0.0
      %579 = vmatpush1.msra.mxu0 0.0
      %580 = vmatprep.subr.mxu0 0.0
      %581 = vmatpush1.msra.mxu0 0.0
      %582 = vmatprep.subr.mxu0 0.0
      %583 = vmatpush1.msra.mxu0 0.0
      %584 = vmatprep.subr.mxu0 0.0
      %585 = vmatpush1.msra.mxu0 0.0
      %586 = vmatprep.subr.mxu0 0.0
      %587 = vmatpush1.msra.mxu0 0.0
      %588 = vmatprep.subr.mxu0 0.0
      %589 = vmatpush1.msra.mxu0 0.0
      %590 = vmatprep.subr.mxu0 0.0
      %591 = vmatpush1.msra.mxu0 0.0
      %592 = vmatprep.subr.mxu0 0.0
      %593 = vmatpush1.msra.mxu0 0.0
      %594 = vmatprep.subr.mxu0 0.0
      %595 = vmatpush1.msra.mxu0 0.0
      %596 = vmatprep.subr.mxu0 0.0
      %597 = vmatpush1.msra.mxu0 0.0
      %598 = vmatprep.subr.mxu0 0.0
      %599 = vmatpush1.msra.mxu0 0.0
      %600 = vmatprep.subr.mxu0 0.0
      %601 = vmatpush1.msra.mxu0 0.0
      %602 = vmatprep.subr.mxu0 0.0
      %603 = vmatpush1.msra.mxu0 0.0
      %604 = vmatprep.mubr.f32.mxu0 0.0
      %605 = vmatmul.mubr.f32.gmra.mrb[0].mxu0 %v534
      %v606 = vpop.f32.mrb[0].mxu0
      %v607 = vadd.f32 %v530, %v606
      %v608 = vpop.f32.mrb[0].mxu0
      %609 = vdwg.mxu0
      %s610 = scalar_lea.vmem %s3, 2
      %v611 = vld [vmem:[%s610] sm:$0x3]
      %s612 = scalar_lea.vmem %s4, 1
      %v613 = vld [vmem:[%s612] sm:$0x1]
      %v615 = vlaneseq
      %v616 = vshrl.u32 %v615, 7
      %v617 = vsub.s32 0, %v616
      %v618 = vrot.slane %v613, %v617
      %v621 = vsel %vm536, %v611, 0
      %623 = vmatprep.subr.mxu0 0.0
      %624 = vmatpush1.msra.mxu0 %v621
      %625 = vmatprep.subr.mxu0 0.0
      %626 = vmatpush1.msra.mxu0 0.0
      %627 = vmatprep.subr.mxu0 0.0
      %628 = vmatpush1.msra.mxu0 0.0
      %629 = vmatprep.subr.mxu0 0.0
      %630 = vmatpush1.msra.mxu0 0.0
      %631 = vmatprep.subr.mxu0 0.0
      %632 = vmatpush1.msra.mxu0 0.0
      %633 = vmatprep.subr.mxu0 0.0
      %634 = vmatpush1.msra.mxu0 0.0
      %635 = vmatprep.subr.mxu0 0.0
      %636 = vmatpush1.msra.mxu0 0.0
      %637 = vmatprep.subr.mxu0 0.0
      %638 = vmatpush1.msra.mxu0 0.0
      %639 = vmatprep.subr.mxu0 0.0
      %640 = vmatpush1.msra.mxu0 0.0
      %641 = vmatprep.subr.mxu0 0.0
      %642 = vmatpush1.msra.mxu0 0.0
      %643 = vmatprep.subr.mxu0 0.0
      %644 = vmatpush1.msra.mxu0 0.0
      %645 = vmatprep.subr.mxu0 0.0
      %646 = vmatpush1.msra.mxu0 0.0
      %647 = vmatprep.subr.mxu0 0.0
      %648 = vmatpush1.msra.mxu0 0.0
      %649 = vmatprep.subr.mxu0 0.0
      %650 = vmatpush1.msra.mxu0 0.0
      %651 = vmatprep.subr.mxu0 0.0
      %652 = vmatpush1.msra.mxu0 0.0
      %653 = vmatprep.subr.mxu0 0.0
      %654 = vmatpush1.msra.mxu0 0.0
      %655 = vmatprep.subr.mxu0 0.0
      %656 = vmatpush1.msra.mxu0 0.0
      %657 = vmatprep.subr.mxu0 0.0
      %658 = vmatpush1.msra.mxu0 0.0
      %659 = vmatprep.subr.mxu0 0.0
      %660 = vmatpush1.msra.mxu0 0.0
      %661 = vmatprep.subr.mxu0 0.0
      %662 = vmatpush1.msra.mxu0 0.0
      %663 = vmatprep.subr.mxu0 0.0
      %664 = vmatpush1.msra.mxu0 0.0
      %665 = vmatprep.subr.mxu0 0.0
      %666 = vmatpush1.msra.mxu0 0.0
      %667 = vmatprep.subr.mxu0 0.0
      %668 = vmatpush1.msra.mxu0 0.0
      %669 = vmatprep.subr.mxu0 0.0
      %670 = vmatpush1.msra.mxu0 0.0
      %671 = vmatprep.subr.mxu0 0.0
      %672 = vmatpush1.msra.mxu0 0.0
      %673 = vmatprep.subr.mxu0 0.0
      %674 = vmatpush1.msra.mxu0 0.0
      %675 = vmatprep.subr.mxu0 0.0
      %676 = vmatpush1.msra.mxu0 0.0
      %677 = vmatprep.subr.mxu0 0.0
      %678 = vmatpush1.msra.mxu0 0.0
      %679 = vmatprep.subr.mxu0 0.0
      %680 = vmatpush1.msra.mxu0 0.0
      %681 = vmatprep.subr.mxu0 0.0
      %682 = vmatpush1.msra.mxu0 0.0
      %683 = vmatprep.subr.mxu0 0.0
      %684 = vmatpush1.msra.mxu0 0.0
      %685 = vmatprep.subr.mxu0 0.0
      %686 = vmatpush1.msra.mxu0 0.0
      %687 = vmatprep.mubr.f32.mxu0 0.0
      %688 = vmatmul.mubr.f32.gmra.mrb[0].mxu0 %v534
      %v689 = vpop.f32.mrb[0].mxu0
      %v690 = vadd.f32 %v618, %v689
      %v691 = vpop.f32.mrb[0].mxu0
      %692 = vdwg.mxu0
      %s693 = scalar_lea.vmem %s3, 4
      %v694 = vld [vmem:[%s693] sm:$0x3]
      %s695 = scalar_lea.vmem %s4, 2
      %v696 = vld [vmem:[%s695] sm:$0x1]
      %v698 = vlaneseq
      %v699 = vshrl.u32 %v698, 7
      %v700 = vsub.s32 0, %v699
      %v701 = vrot.slane %v696, %v700
      %v704 = vsel %vm536, %v694, 0
      %706 = vmatprep.subr.mxu0 0.0
      %707 = vmatpush1.msra.mxu0 %v704
      %708 = vmatprep.subr.mxu0 0.0
      %709 = vmatpush1.msra.mxu0 0.0
      %710 = vmatprep.subr.mxu0 0.0
      %711 = vmatpush1.msra.mxu0 0.0
      %712 = vmatprep.subr.mxu0 0.0
      %713 = vmatpush1.msra.mxu0 0.0
      %714 = vmatprep.subr.mxu0 0.0
      %715 = vmatpush1.msra.mxu0 0.0
      %716 = vmatprep.subr.mxu0 0.0
      %717 = vmatpush1.msra.mxu0 0.0
      %718 = vmatprep.subr.mxu0 0.0
      %719 = vmatpush1.msra.mxu0 0.0
      %720 = vmatprep.subr.mxu0 0.0
      %721 = vmatpush1.msra.mxu0 0.0
      %722 = vmatprep.subr.mxu0 0.0
      %723 = vmatpush1.msra.mxu0 0.0
      %724 = vmatprep.subr.mxu0 0.0
      %725 = vmatpush1.msra.mxu0 0.0
      %726 = vmatprep.subr.mxu0 0.0
      %727 = vmatpush1.msra.mxu0 0.0
      %728 = vmatprep.subr.mxu0 0.0
      %729 = vmatpush1.msra.mxu0 0.0
      %730 = vmatprep.subr.mxu0 0.0
      %731 = vmatpush1.msra.mxu0 0.0
      %732 = vmatprep.subr.mxu0 0.0
      %733 = vmatpush1.msra.mxu0 0.0
      %734 = vmatprep.subr.mxu0 0.0
      %735 = vmatpush1.msra.mxu0 0.0
      %736 = vmatprep.subr.mxu0 0.0
      %737 = vmatpush1.msra.mxu0 0.0
      %738 = vmatprep.subr.mxu0 0.0
      %739 = vmatpush1.msra.mxu0 0.0
      %740 = vmatprep.subr.mxu0 0.0
      %741 = vmatpush1.msra.mxu0 0.0
      %742 = vmatprep.subr.mxu0 0.0
      %743 = vmatpush1.msra.mxu0 0.0
      %744 = vmatprep.subr.mxu0 0.0
      %745 = vmatpush1.msra.mxu0 0.0
      %746 = vmatprep.subr.mxu0 0.0
      %747 = vmatpush1.msra.mxu0 0.0
      %748 = vmatprep.subr.mxu0 0.0
      %749 = vmatpush1.msra.mxu0 0.0
      %750 = vmatprep.subr.mxu0 0.0
      %751 = vmatpush1.msra.mxu0 0.0
      %752 = vmatprep.subr.mxu0 0.0
      %753 = vmatpush1.msra.mxu0 0.0
      %754 = vmatprep.subr.mxu0 0.0
      %755 = vmatpush1.msra.mxu0 0.0
      %756 = vmatprep.subr.mxu0 0.0
      %757 = vmatpush1.msra.mxu0 0.0
      %758 = vmatprep.subr.mxu0 0.0
      %759 = vmatpush1.msra.mxu0 0.0
      %760 = vmatprep.subr.mxu0 0.0
      %761 = vmatpush1.msra.mxu0 0.0
      %762 = vmatprep.subr.mxu0 0.0
      %763 = vmatpush1.msra.mxu0 0.0
      %764 = vmatprep.subr.mxu0 0.0
      %765 = vmatpush1.msra.mxu0 0.0
      %766 = vmatprep.subr.mxu0 0.0
      %767 = vmatpush1.msra.mxu0 0.0
      %768 = vmatprep.subr.mxu0 0.0
      %769 = vmatpush1.msra.mxu0 0.0
      %770 = vmatprep.mubr.f32.mxu0 0.0
      %771 = vmatmul.mubr.f32.gmra.mrb[0].mxu0 %v534
      %v772 = vpop.f32.mrb[0].mxu0
      %v773 = vadd.f32 %v701, %v772
      %v774 = vpop.f32.mrb[0].mxu0
      %775 = vdwg.mxu0
      %v777 = vlaneseq
      %v778 = vshrl.u32 %v777, 7
      %v779 = vsub.s32 0, %v778
      %v780 = vrot.slane %v522, %v779
      %vm782 = vcmask 7168
      %v784 = vsel %vm782, %v607, 0
      %v787 = vsel %vm782, %v690, 0
      %789 = vmatprep.subr.mxu0 0.0
      %790 = vmatpush1.xpose.msra.mxu0 %v787
      %791 = vmatprep.subr.mxu0 0.0
      %792 = vmatpush1.xpose.msra.mxu0 0.0
      %793 = vmatprep.subr.mxu0 0.0
      %794 = vmatpush1.xpose.msra.mxu0 0.0
      %795 = vmatprep.subr.mxu0 0.0
      %796 = vmatpush1.xpose.msra.mxu0 0.0
      %797 = vmatprep.subr.mxu0 0.0
      %798 = vmatpush1.xpose.msra.mxu0 0.0
      %799 = vmatprep.subr.mxu0 0.0
      %800 = vmatpush1.xpose.msra.mxu0 0.0
      %801 = vmatprep.subr.mxu0 0.0
      %802 = vmatpush1.xpose.msra.mxu0 0.0
      %803 = vmatprep.subr.mxu0 0.0
      %804 = vmatpush1.xpose.msra.mxu0 0.0
      %805 = vmatprep.subr.mxu0 0.0
      %806 = vmatpush1.xpose.msra.mxu0 0.0
      %807 = vmatprep.subr.mxu0 0.0
      %808 = vmatpush1.xpose.msra.mxu0 0.0
      %809 = vmatprep.subr.mxu0 0.0
      %810 = vmatpush1.xpose.msra.mxu0 0.0
      %811 = vmatprep.subr.mxu0 0.0
      %812 = vmatpush1.xpose.msra.mxu0 0.0
      %813 = vmatprep.subr.mxu0 0.0
      %814 = vmatpush1.xpose.msra.mxu0 0.0
      %815 = vmatprep.subr.mxu0 0.0
      %816 = vmatpush1.xpose.msra.mxu0 0.0
      %817 = vmatprep.subr.mxu0 0.0
      %818 = vmatpush1.xpose.msra.mxu0 0.0
      %819 = vmatprep.subr.mxu0 0.0
      %820 = vmatpush1.xpose.msra.mxu0 0.0
      %821 = vmatprep.subr.mxu0 0.0
      %822 = vmatpush1.xpose.msra.mxu0 0.0
      %823 = vmatprep.subr.mxu0 0.0
      %824 = vmatpush1.xpose.msra.mxu0 0.0
      %825 = vmatprep.subr.mxu0 0.0
      %826 = vmatpush1.xpose.msra.mxu0 0.0
      %827 = vmatprep.subr.mxu0 0.0
      %828 = vmatpush1.xpose.msra.mxu0 0.0
      %829 = vmatprep.subr.mxu0 0.0
      %830 = vmatpush1.xpose.msra.mxu0 0.0
      %831 = vmatprep.subr.mxu0 0.0
      %832 = vmatpush1.xpose.msra.mxu0 0.0
      %833 = vmatprep.subr.mxu0 0.0
      %834 = vmatpush1.xpose.msra.mxu0 0.0
      %835 = vmatprep.subr.mxu0 0.0
      %836 = vmatpush1.xpose.msra.mxu0 0.0
      %837 = vmatprep.subr.mxu0 0.0
      %838 = vmatpush1.xpose.msra.mxu0 0.0
      %839 = vmatprep.subr.mxu0 0.0
      %840 = vmatpush1.xpose.msra.mxu0 0.0
      %841 = vmatprep.subr.mxu0 0.0
      %842 = vmatpush1.xpose.msra.mxu0 0.0
      %843 = vmatprep.subr.mxu0 0.0
      %844 = vmatpush1.xpose.msra.mxu0 0.0
      %845 = vmatprep.subr.mxu0 0.0
      %846 = vmatpush1.xpose.msra.mxu0 0.0
      %847 = vmatprep.subr.mxu0 0.0
      %848 = vmatpush1.xpose.msra.mxu0 0.0
      %849 = vmatprep.subr.mxu0 0.0
      %850 = vmatpush1.xpose.msra.mxu0 0.0
      %851 = vmatprep.subr.mxu0 0.0
      %852 = vmatpush1.xpose.msra.mxu0 0.0
      %853 = vmatprep.mubr.f32.mxu0 0.0
      %854 = vmatmul.mubr.f32.gmra.mrb[0].mxu0 %v784
      %v855 = vpop.f32.mrb[0].mxu0
      %v856 = vadd.f32 %v780, %v855
      %v857 = vpop.f32.mrb[0].mxu0
      %858 = vdwg.mxu0
      %vm859 = vcmask 64512
      %v860 = vsel %vm859, %v856, -inf
      %861 = vmax.xlane.f32.xlu0 %v860
      %v862 = vpop.xlane.xlu0 %861
      %v863 = vsub.f32 %v856, %v862
      %v864 = vmul.f32 %v863, 1.442695
      %v865 = vpow.pop %v864
      %v866 = vsel %vm859, %v865, 0.0
      %867 = vadd.xlane.f32.xlu0 %v866
      %v868 = vpop.xlane.xlu0 %867
      %v869 = vrcp.pop %v868
      %v870 = vmul.f32 %v865, %v869
      %v872 = vsel %vm859, %v870, 0
      %874 = vmatprep.subr.mxu0 0.0
      %875 = vmatpush1.msra.mxu0 %v773
      %876 = vmatprep.subr.mxu0 0.0
      %877 = vmatpush1.msra.mxu0 0.0
      %878 = vmatprep.subr.mxu0 0.0
      %879 = vmatpush1.msra.mxu0 0.0
      %880 = vmatprep.subr.mxu0 0.0
      %881 = vmatpush1.msra.mxu0 0.0
      %882 = vmatprep.subr.mxu0 0.0
      %883 = vmatpush1.msra.mxu0 0.0
      %884 = vmatprep.subr.mxu0 0.0
      %885 = vmatpush1.msra.mxu0 0.0
      %886 = vmatprep.subr.mxu0 0.0
      %887 = vmatpush1.msra.mxu0 0.0
      %888 = vmatprep.subr.mxu0 0.0
      %889 = vmatpush1.msra.mxu0 0.0
      %890 = vmatprep.subr.mxu0 0.0
      %891 = vmatpush1.msra.mxu0 0.0
      %892 = vmatprep.subr.mxu0 0.0
      %893 = vmatpush1.msra.mxu0 0.0
      %894 = vmatprep.subr.mxu0 0.0
      %895 = vmatpush1.msra.mxu0 0.0
      %896 = vmatprep.subr.mxu0 0.0
      %897 = vmatpush1.msra.mxu0 0.0
      %898 = vmatprep.subr.mxu0 0.0
      %899 = vmatpush1.msra.mxu0 0.0
      %900 = vmatprep.subr.mxu0 0.0
      %901 = vmatpush1.msra.mxu0 0.0
      %902 = vmatprep.subr.mxu0 0.0
      %903 = vmatpush1.msra.mxu0 0.0
      %904 = vmatprep.subr.mxu0 0.0
      %905 = vmatpush1.msra.mxu0 0.0
      %906 = vmatprep.subr.mxu0 0.0
      %907 = vmatpush1.msra.mxu0 0.0
      %908 = vmatprep.subr.mxu0 0.0
      %909 = vmatpush1.msra.mxu0 0.0
      %910 = vmatprep.subr.mxu0 0.0
      %911 = vmatpush1.msra.mxu0 0.0
      %912 = vmatprep.subr.mxu0 0.0
      %913 = vmatpush1.msra.mxu0 0.0
      %914 = vmatprep.subr.mxu0 0.0
      %915 = vmatpush1.msra.mxu0 0.0
      %916 = vmatprep.subr.mxu0 0.0
      %917 = vmatpush1.msra.mxu0 0.0
      %918 = vmatprep.subr.mxu0 0.0
      %919 = vmatpush1.msra.mxu0 0.0
      %920 = vmatprep.subr.mxu0 0.0
      %921 = vmatpush1.msra.mxu0 0.0
      %922 = vmatprep.subr.mxu0 0.0
      %923 = vmatpush1.msra.mxu0 0.0
      %924 = vmatprep.subr.mxu0 0.0
      %925 = vmatpush1.msra.mxu0 0.0
      %926 = vmatprep.subr.mxu0 0.0
      %927 = vmatpush1.msra.mxu0 0.0
      %928 = vmatprep.subr.mxu0 0.0
      %929 = vmatpush1.msra.mxu0 0.0
      %930 = vmatprep.subr.mxu0 0.0
      %931 = vmatpush1.msra.mxu0 0.0
      %932 = vmatprep.subr.mxu0 0.0
      %933 = vmatpush1.msra.mxu0 0.0
      %934 = vmatprep.subr.mxu0 0.0
      %935 = vmatpush1.msra.mxu0 0.0
      %936 = vmatprep.subr.mxu0 0.0
      %937 = vmatpush1.msra.mxu0 0.0
      %938 = vmatprep.mubr.f32.mxu0 0.0
      %939 = vmatmul.mubr.f32.gmra.mrb[0].mxu0 %v872
      %v940 = vpop.f32.mrb[0].mxu0
      %v941 = vadd.f32 0.0, %v940
      %v942 = vpop.f32.mrb[0].mxu0
      %943 = vdwg.mxu0
      %v944 = vld [vmem:[%s5] sm:$0x1]
      %v945 = vld [vmem:[%s6] sm:$0x1]
      %v947 = vlaneseq
      %v948 = vshrl.u32 %v947, 7
      %v949 = vsub.s32 0, %v948
      %v950 = vrot.slane %v945, %v949
      %v953 = vsel %vm782, %v941, 0
      %vm955 = vcmask 1040384
      %v957 = vsel %vm955, %v944, 0
      %959 = vmatprep.subr.mxu0 0.0
      %960 = vmatpush1.msra.mxu0 %v957
      %961 = vmatprep.subr.mxu0 0.0
      %962 = vmatpush1.msra.mxu0 0.0
      %963 = vmatprep.subr.mxu0 0.0
      %964 = vmatpush1.msra.mxu0 0.0
      %965 = vmatprep.subr.mxu0 0.0
      %966 = vmatpush1.msra.mxu0 0.0
      %967 = vmatprep.subr.mxu0 0.0
      %968 = vmatpush1.msra.mxu0 0.0
      %969 = vmatprep.subr.mxu0 0.0
      %970 = vmatpush1.msra.mxu0 0.0
      %971 = vmatprep.subr.mxu0 0.0
      %972 = vmatpush1.msra.mxu0 0.0
      %973 = vmatprep.subr.mxu0 0.0
      %974 = vmatpush1.msra.mxu0 0.0
      %975 = vmatprep.subr.mxu0 0.0
      %976 = vmatpush1.msra.mxu0 0.0
      %977 = vmatprep.subr.mxu0 0.0
      %978 = vmatpush1.msra.mxu0 0.0
      %979 = vmatprep.subr.mxu0 0.0
      %980 = vmatpush1.msra.mxu0 0.0
      %981 = vmatprep.subr.mxu0 0.0
      %982 = vmatpush1.msra.mxu0 0.0
      %983 = vmatprep.subr.mxu0 0.0
      %984 = vmatpush1.msra.mxu0 0.0
      %985 = vmatprep.subr.mxu0 0.0
      %986 = vmatpush1.msra.mxu0 0.0
      %987 = vmatprep.subr.mxu0 0.0
      %988 = vmatpush1.msra.mxu0 0.0
      %989 = vmatprep.subr.mxu0 0.0
      %990 = vmatpush1.msra.mxu0 0.0
      %991 = vmatprep.subr.mxu0 0.0
      %992 = vmatpush1.msra.mxu0 0.0
      %993 = vmatprep.subr.mxu0 0.0
      %994 = vmatpush1.msra.mxu0 0.0
      %995 = vmatprep.subr.mxu0 0.0
      %996 = vmatpush1.msra.mxu0 0.0
      %997 = vmatprep.subr.mxu0 0.0
      %998 = vmatpush1.msra.mxu0 0.0
      %999 = vmatprep.subr.mxu0 0.0
      %1000 = vmatpush1.msra.mxu0 0.0
      %1001 = vmatprep.subr.mxu0 0.0
      %1002 = vmatpush1.msra.mxu0 0.0
      %1003 = vmatprep.subr.mxu0 0.0
      %1004 = vmatpush1.msra.mxu0 0.0
      %1005 = vmatprep.subr.mxu0 0.0
      %1006 = vmatpush1.msra.mxu0 0.0
      %1007 = vmatprep.subr.mxu0 0.0
      %1008 = vmatpush1.msra.mxu0 0.0
      %1009 = vmatprep.subr.mxu0 0.0
      %1010 = vmatpush1.msra.mxu0 0.0
      %1011 = vmatprep.subr.mxu0 0.0
      %1012 = vmatpush1.msra.mxu0 0.0
      %1013 = vmatprep.subr.mxu0 0.0
      %1014 = vmatpush1.msra.mxu0 0.0
      %1015 = vmatprep.subr.mxu0 0.0
      %1016 = vmatpush1.msra.mxu0 0.0
      %1017 = vmatprep.subr.mxu0 0.0
      %1018 = vmatpush1.msra.mxu0 0.0
      %1019 = vmatprep.subr.mxu0 0.0
      %1020 = vmatpush1.msra.mxu0 0.0
      %1021 = vmatprep.subr.mxu0 0.0
      %1022 = vmatpush1.msra.mxu0 0.0
      %1023 = vmatprep.mubr.f32.mxu0 0.0
      %1024 = vmatmul.mubr.f32.gmra.mrb[0].mxu0 %v953
      %v1025 = vpop.f32.mrb[0].mxu0
      %v1026 = vadd.f32 %v950, %v1025
      %v1027 = vpop.f32.mrb[0].mxu0
      %1028 = vdwg.mxu0
      %v1029 = vadd.f32 %v1026, %v521
      %v1030 = vld [vmem:[%s7] sm:$0x1]
      %v1031 = vld [vmem:[%s8] sm:$0x1]
      %v1032 = vsel %vm532, %v1029, 0.0
      %1033 = vadd.xlane.f32.xlu0 %v1032
      %v1034 = vpop.xlane.xlu0 %1033
      %v1035 = vrcp.pop 2.0
      %v1036 = vmul.f32 %v1034, %v1035
      %v1037 = vsub.f32 %v1029, %v1036
      %v1038 = vmul.f32 %v1037, %v1037
      %v1039 = vsel %vm532, %v1038, 0.0
      %1040 = vadd.xlane.f32.xlu0 %v1039
      %v1041 = vpop.xlane.xlu0 %1040
      %v1042 = vmul.f32 %v1041, %v1035
      %v1043 = vadd.f32 %v1042, 1e-05
      %v1044 = vrsqrt.pop %v1043
      %v1045 = vmul.f32 %v1037, %v1044
      %v1047 = vlaneseq
      %v1048 = vshrl.u32 %v1047, 7
      %v1049 = vsub.s32 0, %v1048
      %v1050 = vrot.slane %v1030, %v1049
      %v1052 = vmul.f32 %v1045, %v1050
      %v1054 = vlaneseq
      %v1055 = vshrl.u32 %v1054, 7
      %v1056 = vsub.s32 0, %v1055
      %v1057 = vrot.slane %v1031, %v1056
      %v1059 = vadd.f32 %v1052, %v1057
      %1061 = vset.pattern.permute.xlu0 0
      %1062 = vperm.xlu0 %1061, %v523
      %v1063 = vpop.permute.xlu0 %1062
      %v1065 = vmul.f32 %v1059, %v1063
      %v1066 = vld [vmem:[%s10] sm:$0x1]
      %1067 = vst.msk [vmem:[#allocation2] sm:$0xff] %vm532, 0.0
      %1068 = vst.msk [vmem:[#allocation2 + $0x8] sm:$0xff] %vm532, 0.0
      %vm1069 = vcmask 11264
      %1070 = vst.msk [vmem:[#allocation2 + $0x10] sm:$0xf] %vm1069, 0.0
      %1071 = vst.msk [vmem:[#allocation2 + $0x8] sm:$0xff] %vm532, %v1065
      %v1073 = vlaneseq
      %v1074 = vshrl.u32 %v1073, 7
      %v1075 = vsub.s32 0, %v1074
      %v1076 = vrot.slane %v1066, %v1075
      %v1078 = vadd.f32 %v1076, 0.0
      %v1079 = vld [vmem:[#allocation2 + $0x4] sm:$0xff]
      %v1080 = vld [vmem:[%s9] sm:$0x3]
      %v1082 = vsel %vm532, %v1079, 0
      %v1085 = vsel %vm536, %v1080, 0
      %1087 = vmatprep.subr.mxu0 0.0
      %1088 = vmatpush1.msra.mxu0 %v1085
      %1089 = vmatprep.subr.mxu0 0.0
      %1090 = vmatpush1.msra.mxu0 0.0
      %1091 = vmatprep.subr.mxu0 0.0
      %1092 = vmatpush1.msra.mxu0 0.0
      %1093 = vmatprep.subr.mxu0 0.0
      %1094 = vmatpush1.msra.mxu0 0.0
      %1095 = vmatprep.subr.mxu0 0.0
      %1096 = vmatpush1.msra.mxu0 0.0
      %1097 = vmatprep.subr.mxu0 0.0
      %1098 = vmatpush1.msra.mxu0 0.0
      %1099 = vmatprep.subr.mxu0 0.0
      %1100 = vmatpush1.msra.mxu0 0.0
      %1101 = vmatprep.subr.mxu0 0.0
      %1102 = vmatpush1.msra.mxu0 0.0
      %1103 = vmatprep.subr.mxu0 0.0
      %1104 = vmatpush1.msra.mxu0 0.0
      %1105 = vmatprep.subr.mxu0 0.0
      %1106 = vmatpush1.msra.mxu0 0.0
      %1107 = vmatprep.subr.mxu0 0.0
      %1108 = vmatpush1.msra.mxu0 0.0
      %1109 = vmatprep.subr.mxu0 0.0
      %1110 = vmatpush1.msra.mxu0 0.0
      %1111 = vmatprep.subr.mxu0 0.0
      %1112 = vmatpush1.msra.mxu0 0.0
      %1113 = vmatprep.subr.mxu0 0.0
      %1114 = vmatpush1.msra.mxu0 0.0
      %1115 = vmatprep.subr.mxu0 0.0
      %1116 = vmatpush1.msra.mxu0 0.0
      %1117 = vmatprep.subr.mxu0 0.0
      %1118 = vmatpush1.msra.mxu0 0.0
      %1119 = vmatprep.subr.mxu0 0.0
      %1120 = vmatpush1.msra.mxu0 0.0
      %1121 = vmatprep.subr.mxu0 0.0
      %1122 = vmatpush1.msra.mxu0 0.0
      %1123 = vmatprep.subr.mxu0 0.0
      %1124 = vmatpush1.msra.mxu0 0.0
      %1125 = vmatprep.subr.mxu0 0.0
      %1126 = vmatpush1.msra.mxu0 0.0
      %1127 = vmatprep.subr.mxu0 0.0
      %1128 = vmatpush1.msra.mxu0 0.0
      %1129 = vmatprep.subr.mxu0 0.0
      %1130 = vmatpush1.msra.mxu0 0.0
      %1131 = vmatprep.subr.mxu0 0.0
      %1132 = vmatpush1.msra.mxu0 0.0
      %1133 = vmatprep.subr.mxu0 0.0
      %1134 = vmatpush1.msra.mxu0 0.0
      %1135 = vmatprep.subr.mxu0 0.0
      %1136 = vmatpush1.msra.mxu0 0.0
      %1137 = vmatprep.subr.mxu0 0.0
      %1138 = vmatpush1.msra.mxu0 0.0
      %1139 = vmatprep.subr.mxu0 0.0
      %1140 = vmatpush1.msra.mxu0 0.0
      %1141 = vmatprep.subr.mxu0 0.0
      %1142 = vmatpush1.msra.mxu0 0.0
      %1143 = vmatprep.subr.mxu0 0.0
      %1144 = vmatpush1.msra.mxu0 0.0
      %1145 = vmatprep.subr.mxu0 0.0
      %1146 = vmatpush1.msra.mxu0 0.0
      %1147 = vmatprep.subr.mxu0 0.0
      %1148 = vmatpush1.msra.mxu0 0.0
      %1149 = vmatprep.subr.mxu0 0.0
      %1150 = vmatpush1.msra.mxu0 0.0
      %1151 = vmatprep.mubr.f32.mxu0 0.0
      %1152 = vmatmul.mubr.f32.gmra.mrb[0].mxu0 %v1082
      %v1153 = vpop.f32.mrb[0].mxu0
      %v1154 = vadd.f32 0.0, %v1153
      %v1155 = vpop.f32.mrb[0].mxu0
      %1156 = vdwg.mxu0
      %v1157 = vadd.f32 %v1078, %v1154
      %v1158 = vld [vmem:[#allocation2 + $0x5] sm:$0xff]
      %s1159 = scalar_lea.vmem %s9, 2
      %v1160 = vld [vmem:[%s1159] sm:$0x3]
      %v1162 = vsel %vm532, %v1158, 0
      %v1165 = vsel %vm536, %v1160, 0
      %1167 = vmatprep.subr.mxu0 0.0
      %1168 = vmatpush1.msra.mxu0 %v1165
      %1169 = vmatprep.subr.mxu0 0.0
      %1170 = vmatpush1.msra.mxu0 0.0
      %1171 = vmatprep.subr.mxu0 0.0
      %1172 = vmatpush1.msra.mxu0 0.0
      %1173 = vmatprep.subr.mxu0 0.0
      %1174 = vmatpush1.msra.mxu0 0.0
      %1175 = vmatprep.subr.mxu0 0.0
      %1176 = vmatpush1.msra.mxu0 0.0
      %1177 = vmatprep.subr.mxu0 0.0
      %1178 = vmatpush1.msra.mxu0 0.0
      %1179 = vmatprep.subr.mxu0 0.0
      %1180 = vmatpush1.msra.mxu0 0.0
      %1181 = vmatprep.subr.mxu0 0.0
      %1182 = vmatpush1.msra.mxu0 0.0
      %1183 = vmatprep.subr.mxu0 0.0
      %1184 = vmatpush1.msra.mxu0 0.0
      %1185 = vmatprep.subr.mxu0 0.0
      %1186 = vmatpush1.msra.mxu0 0.0
      %1187 = vmatprep.subr.mxu0 0.0
      %1188 = vmatpush1.msra.mxu0 0.0
      %1189 = vmatprep.subr.mxu0 0.0
      %1190 = vmatpush1.msra.mxu0 0.0
      %1191 = vmatprep.subr.mxu0 0.0
      %1192 = vmatpush1.msra.mxu0 0.0
      %1193 = vmatprep.subr.mxu0 0.0
      %1194 = vmatpush1.msra.mxu0 0.0
      %1195 = vmatprep.subr.mxu0 0.0
      %1196 = vmatpush1.msra.mxu0 0.0
      %1197 = vmatprep.subr.mxu0 0.0
      %1198 = vmatpush1.msra.mxu0 0.0
      %1199 = vmatprep.subr.mxu0 0.0
      %1200 = vmatpush1.msra.mxu0 0.0
      %1201 = vmatprep.subr.mxu0 0.0
      %1202 = vmatpush1.msra.mxu0 0.0
      %1203 = vmatprep.subr.mxu0 0.0
      %1204 = vmatpush1.msra.mxu0 0.0
      %1205 = vmatprep.subr.mxu0 0.0
      %1206 = vmatpush1.msra.mxu0 0.0
      %1207 = vmatprep.subr.mxu0 0.0
      %1208 = vmatpush1.msra.mxu0 0.0
      %1209 = vmatprep.subr.mxu0 0.0
      %1210 = vmatpush1.msra.mxu0 0.0
      %1211 = vmatprep.subr.mxu0 0.0
      %1212 = vmatpush1.msra.mxu0 0.0
      %1213 = vmatprep.subr.mxu0 0.0
      %1214 = vmatpush1.msra.mxu0 0.0
      %1215 = vmatprep.subr.mxu0 0.0
      %1216 = vmatpush1.msra.mxu0 0.0
      %1217 = vmatprep.subr.mxu0 0.0
      %1218 = vmatpush1.msra.mxu0 0.0
      %1219 = vmatprep.subr.mxu0 0.0
      %1220 = vmatpush1.msra.mxu0 0.0
      %1221 = vmatprep.subr.mxu0 0.0
      %1222 = vmatpush1.msra.mxu0 0.0
      %1223 = vmatprep.subr.mxu0 0.0
      %1224 = vmatpush1.msra.mxu0 0.0
      %1225 = vmatprep.subr.mxu0 0.0
      %1226 = vmatpush1.msra.mxu0 0.0
      %1227 = vmatprep.subr.mxu0 0.0
      %1228 = vmatpush1.msra.mxu0 0.0
      %1229 = vmatprep.subr.mxu0 0.0
      %1230 = vmatpush1.msra.mxu0 0.0
      %1231 = vmatprep.mubr.f32.mxu0 0.0
      %1232 = vmatmul.mubr.f32.gmra.mrb[0].mxu0 %v1162
      %v1233 = vpop.f32.mrb[0].mxu0
      %v1234 = vadd.f32 0.0, %v1233
      %v1235 = vpop.f32.mrb[0].mxu0
      %1236 = vdwg.mxu0
      %v1237 = vadd.f32 %v1157, %v1234
      %v1238 = vld [vmem:[#allocation2 + $0x6] sm:$0xff]
      %s1239 = scalar_lea.vmem %s9, 4
      %v1240 = vld [vmem:[%s1239] sm:$0x3]
      %v1242 = vsel %vm532, %v1238, 0
      %v1245 = vsel %vm536, %v1240, 0
      %1247 = vmatprep.subr.mxu0 0.0
      %1248 = vmatpush1.msra.mxu0 %v1245
      %1249 = vmatprep.subr.mxu0 0.0
      %1250 = vmatpush1.msra.mxu0 0.0
      %1251 = vmatprep.subr.mxu0 0.0
      %1252 = vmatpush1.msra.mxu0 0.0
      %1253 = vmatprep.subr.mxu0 0.0
      %1254 = vmatpush1.msra.mxu0 0.0
      %1255 = vmatprep.subr.mxu0 0.0
      %1256 = vmatpush1.msra.mxu0 0.0
      %1257 = vmatprep.subr.mxu0 0.0
      %1258 = vmatpush1.msra.mxu0 0.0
      %1259 = vmatprep.subr.mxu0 0.0
      %1260 = vmatpush1.msra.mxu0 0.0
      %1261 = vmatprep.subr.mxu0 0.0
      %1262 = vmatpush1.msra.mxu0 0.0
      %1263 = vmatprep.subr.mxu0 0.0
      %1264 = vmatpush1.msra.mxu0 0.0
      %1265 = vmatprep.subr.mxu0 0.0
      %1266 = vmatpush1.msra.mxu0 0.0
      %1267 = vmatprep.subr.mxu0 0.0
      %1268 = vmatpush1.msra.mxu0 0.0
      %1269 = vmatprep.subr.mxu0 0.0
      %1270 = vmatpush1.msra.mxu0 0.0
      %1271 = vmatprep.subr.mxu0 0.0
      %1272 = vmatpush1.msra.mxu0 0.0
      %1273 = vmatprep.subr.mxu0 0.0
      %1274 = vmatpush1.msra.mxu0 0.0
      %1275 = vmatprep.subr.mxu0 0.0
      %1276 = vmatpush1.msra.mxu0 0.0
      %1277 = vmatprep.subr.mxu0 0.0
      %1278 = vmatpush1.msra.mxu0 0.0
      %1279 = vmatprep.subr.mxu0 0.0
      %1280 = vmatpush1.msra.mxu0 0.0
      %1281 = vmatprep.subr.mxu0 0.0
      %1282 = vmatpush1.msra.mxu0 0.0
      %1283 = vmatprep.subr.mxu0 0.0
      %1284 = vmatpush1.msra.mxu0 0.0
      %1285 = vmatprep.subr.mxu0 0.0
      %1286 = vmatpush1.msra.mxu0 0.0
      %1287 = vmatprep.subr.mxu0 0.0
      %1288 = vmatpush1.msra.mxu0 0.0
      %1289 = vmatprep.subr.mxu0 0.0
      %1290 = vmatpush1.msra.mxu0 0.0
      %1291 = vmatprep.subr.mxu0 0.0
      %1292 = vmatpush1.msra.mxu0 0.0
      %1293 = vmatprep.subr.mxu0 0.0
      %1294 = vmatpush1.msra.mxu0 0.0
      %1295 = vmatprep.subr.mxu0 0.0
      %1296 = vmatpush1.msra.mxu0 0.0
      %1297 = vmatprep.subr.mxu0 0.0
      %1298 = vmatpush1.msra.mxu0 0.0
      %1299 = vmatprep.subr.mxu0 0.0
      %1300 = vmatpush1.msra.mxu0 0.0
      %1301 = vmatprep.subr.mxu0 0.0
      %1302 = vmatpush1.msra.mxu0 0.0
      %1303 = vmatprep.subr.mxu0 0.0
      %1304 = vmatpush1.msra.mxu0 0.0
      %1305 = vmatprep.subr.mxu0 0.0
      %1306 = vmatpush1.msra.mxu0 0.0
      %1307 = vmatprep.subr.mxu0 0.0
      %1308 = vmatpush1.msra.mxu0 0.0
      %1309 = vmatprep.subr.mxu0 0.0
      %1310 = vmatpush1.msra.mxu0 0.0
      %1311 = vmatprep.mubr.f32.mxu0 0.0
      %1312 = vmatmul.mubr.f32.gmra.mrb[0].mxu0 %v1242
      %v1313 = vpop.f32.mrb[0].mxu0
      %v1314 = vadd.f32 0.0, %v1313
      %v1315 = vpop.f32.mrb[0].mxu0
      %1316 = vdwg.mxu0
      %v1317 = vadd.f32 %v1237, %v1314
      %v1318 = vld [vmem:[#allocation2 + $0x7] sm:$0xff]
      %s1319 = scalar_lea.vmem %s9, 6
      %v1320 = vld [vmem:[%s1319] sm:$0x3]
      %v1322 = vsel %vm532, %v1318, 0
      %v1325 = vsel %vm536, %v1320, 0
      %1327 = vmatprep.subr.mxu0 0.0
      %1328 = vmatpush1.msra.mxu0 %v1325
      %1329 = vmatprep.subr.mxu0 0.0
      %1330 = vmatpush1.msra.mxu0 0.0
      %1331 = vmatprep.subr.mxu0 0.0
      %1332 = vmatpush1.msra.mxu0 0.0
      %1333 = vmatprep.subr.mxu0 0.0
      %1334 = vmatpush1.msra.mxu0 0.0
      %1335 = vmatprep.subr.mxu0 0.0
      %1336 = vmatpush1.msra.mxu0 0.0
      %1337 = vmatprep.subr.mxu0 0.0
      %1338 = vmatpush1.msra.mxu0 0.0
      %1339 = vmatprep.subr.mxu0 0.0
      %1340 = vmatpush1.msra.mxu0 0.0
      %1341 = vmatprep.subr.mxu0 0.0
      %1342 = vmatpush1.msra.mxu0 0.0
      %1343 = vmatprep.subr.mxu0 0.0
      %1344 = vmatpush1.msra.mxu0 0.0
      %1345 = vmatprep.subr.mxu0 0.0
      %1346 = vmatpush1.msra.mxu0 0.0
      %1347 = vmatprep.subr.mxu0 0.0
      %1348 = vmatpush1.msra.mxu0 0.0
      %1349 = vmatprep.subr.mxu0 0.0
      %1350 = vmatpush1.msra.mxu0 0.0
      %1351 = vmatprep.subr.mxu0 0.0
      %1352 = vmatpush1.msra.mxu0 0.0
      %1353 = vmatprep.subr.mxu0 0.0
      %1354 = vmatpush1.msra.mxu0 0.0
      %1355 = vmatprep.subr.mxu0 0.0
      %1356 = vmatpush1.msra.mxu0 0.0
      %1357 = vmatprep.subr.mxu0 0.0
      %1358 = vmatpush1.msra.mxu0 0.0
      %1359 = vmatprep.subr.mxu0 0.0
      %1360 = vmatpush1.msra.mxu0 0.0
      %1361 = vmatprep.subr.mxu0 0.0
      %1362 = vmatpush1.msra.mxu0 0.0
      %1363 = vmatprep.subr.mxu0 0.0
      %1364 = vmatpush1.msra.mxu0 0.0
      %1365 = vmatprep.subr.mxu0 0.0
      %1366 = vmatpush1.msra.mxu0 0.0
      %1367 = vmatprep.subr.mxu0 0.0
      %1368 = vmatpush1.msra.mxu0 0.0
      %1369 = vmatprep.subr.mxu0 0.0
      %1370 = vmatpush1.msra.mxu0 0.0
      %1371 = vmatprep.subr.mxu0 0.0
      %1372 = vmatpush1.msra.mxu0 0.0
      %1373 = vmatprep.subr.mxu0 0.0
      %1374 = vmatpush1.msra.mxu0 0.0
      %1375 = vmatprep.subr.mxu0 0.0
      %1376 = vmatpush1.msra.mxu0 0.0
      %1377 = vmatprep.subr.mxu0 0.0
      %1378 = vmatpush1.msra.mxu0 0.0
      %1379 = vmatprep.subr.mxu0 0.0
      %1380 = vmatpush1.msra.mxu0 0.0
      %1381 = vmatprep.subr.mxu0 0.0
      %1382 = vmatpush1.msra.mxu0 0.0
      %1383 = vmatprep.subr.mxu0 0.0
      %1384 = vmatpush1.msra.mxu0 0.0
      %1385 = vmatprep.subr.mxu0 0.0
      %1386 = vmatpush1.msra.mxu0 0.0
      %1387 = vmatprep.subr.mxu0 0.0
      %1388 = vmatpush1.msra.mxu0 0.0
      %1389 = vmatprep.subr.mxu0 0.0
      %1390 = vmatpush1.msra.mxu0 0.0
      %1391 = vmatprep.mubr.f32.mxu0 0.0
      %1392 = vmatmul.mubr.f32.gmra.mrb[0].mxu0 %v1322
      %v1393 = vpop.f32.mrb[0].mxu0
      %v1394 = vadd.f32 0.0, %v1393
      %v1395 = vpop.f32.mrb[0].mxu0
      %1396 = vdwg.mxu0
      %v1397 = vadd.f32 %v1317, %v1394
      %v1398 = vld [vmem:[#allocation2 + $0x8] sm:$0xff]
      %s1399 = scalar_lea.vmem %s9, 8
      %v1400 = vld [vmem:[%s1399] sm:$0x3]
      %v1402 = vsel %vm532, %v1398, 0
      %v1405 = vsel %vm536, %v1400, 0
      %1407 = vmatprep.subr.mxu0 0.0
      %1408 = vmatpush1.msra.mxu0 %v1405
      %1409 = vmatprep.subr.mxu0 0.0
      %1410 = vmatpush1.msra.mxu0 0.0
      %1411 = vmatprep.subr.mxu0 0.0
      %1412 = vmatpush1.msra.mxu0 0.0
      %1413 = vmatprep.subr.mxu0 0.0
      %1414 = vmatpush1.msra.mxu0 0.0
      %1415 = vmatprep.subr.mxu0 0.0
      %1416 = vmatpush1.msra.mxu0 0.0
      %1417 = vmatprep.subr.mxu0 0.0
      %1418 = vmatpush1.msra.mxu0 0.0
      %1419 = vmatprep.subr.mxu0 0.0
      %1420 = vmatpush1.msra.mxu0 0.0
      %1421 = vmatprep.subr.mxu0 0.0
      %1422 = vmatpush1.msra.mxu0 0.0
      %1423 = vmatprep.subr.mxu0 0.0
      %1424 = vmatpush1.msra.mxu0 0.0
      %1425 = vmatprep.subr.mxu0 0.0
      %1426 = vmatpush1.msra.mxu0 0.0
      %1427 = vmatprep.subr.mxu0 0.0
      %1428 = vmatpush1.msra.mxu0 0.0
      %1429 = vmatprep.subr.mxu0 0.0
      %1430 = vmatpush1.msra.mxu0 0.0
      %1431 = vmatprep.subr.mxu0 0.0
      %1432 = vmatpush1.msra.mxu0 0.0
      %1433 = vmatprep.subr.mxu0 0.0
      %1434 = vmatpush1.msra.mxu0 0.0
      %1435 = vmatprep.subr.mxu0 0.0
      %1436 = vmatpush1.msra.mxu0 0.0
      %1437 = vmatprep.subr.mxu0 0.0
      %1438 = vmatpush1.msra.mxu0 0.0
      %1439 = vmatprep.subr.mxu0 0.0
      %1440 = vmatpush1.msra.mxu0 0.0
      %1441 = vmatprep.subr.mxu0 0.0
      %1442 = vmatpush1.msra.mxu0 0.0
      %1443 = vmatprep.subr.mxu0 0.0
      %1444 = vmatpush1.msra.mxu0 0.0
      %1445 = vmatprep.subr.mxu0 0.0
      %1446 = vmatpush1.msra.mxu0 0.0
      %1447 = vmatprep.subr.mxu0 0.0
      %1448 = vmatpush1.msra.mxu0 0.0
      %1449 = vmatprep.subr.mxu0 0.0
      %1450 = vmatpush1.msra.mxu0 0.0
      %1451 = vmatprep.subr.mxu0 0.0
      %1452 = vmatpush1.msra.mxu0 0.0
      %1453 = vmatprep.subr.mxu0 0.0
      %1454 = vmatpush1.msra.mxu0 0.0
      %1455 = vmatprep.subr.mxu0 0.0
      %1456 = vmatpush1.msra.mxu0 0.0
      %1457 = vmatprep.subr.mxu0 0.0
      %1458 = vmatpush1.msra.mxu0 0.0
      %1459 = vmatprep.subr.mxu0 0.0
      %1460 = vmatpush1.msra.mxu0 0.0
      %1461 = vmatprep.subr.mxu0 0.0
      %1462 = vmatpush1.msra.mxu0 0.0
      %1463 = vmatprep.subr.mxu0 0.0
      %1464 = vmatpush1.msra.mxu0 0.0
      %1465 = vmatprep.subr.mxu0 0.0
      %1466 = vmatpush1.msra.mxu0 0.0
      %1467 = vmatprep.subr.mxu0 0.0
      %1468 = vmatpush1.msra.mxu0 0.0
      %1469 = vmatprep.subr.mxu0 0.0
      %1470 = vmatpush1.msra.mxu0 0.0
      %1471 = vmatprep.mubr.f32.mxu0 0.0
      %1472 = vmatmul.mubr.f32.gmra.mrb[0].mxu0 %v1402
      %v1473 = vpop.f32.mrb[0].mxu0
      %v1474 = vadd.f32 0.0, %v1473
      %v1475 = vpop.f32.mrb[0].mxu0
      %1476 = vdwg.mxu0
      %v1477 = vadd.f32 %v1397, %v1474
      %v1478 = vld [vmem:[#allocation2 + $0x9] sm:$0xff]
      %s1479 = scalar_lea.vmem %s9, 10
      %v1480 = vld [vmem:[%s1479] sm:$0x3]
      %v1482 = vsel %vm532, %v1478, 0
      %v1485 = vsel %vm536, %v1480, 0
      %1487 = vmatprep.subr.mxu0 0.0
      %1488 = vmatpush1.msra.mxu0 %v1485
      %1489 = vmatprep.subr.mxu0 0.0
      %1490 = vmatpush1.msra.mxu0 0.0
      %1491 = vmatprep.subr.mxu0 0.0
      %1492 = vmatpush1.msra.mxu0 0.0
      %1493 = vmatprep.subr.mxu0 0.0
      %1494 = vmatpush1.msra.mxu0 0.0
      %1495 = vmatprep.subr.mxu0 0.0
      %1496 = vmatpush1.msra.mxu0 0.0
      %1497 = vmatprep.subr.mxu0 0.0
      %1498 = vmatpush1.msra.mxu0 0.0
      %1499 = vmatprep.subr.mxu0 0.0
      %1500 = vmatpush1.msra.mxu0 0.0
      %1501 = vmatprep.subr.mxu0 0.0
      %1502 = vmatpush1.msra.mxu0 0.0
      %1503 = vmatprep.subr.mxu0 0.0
      %1504 = vmatpush1.msra.mxu0 0.0
      %1505 = vmatprep.subr.mxu0 0.0
      %1506 = vmatpush1.msra.mxu0 0.0
      %1507 = vmatprep.subr.mxu0 0.0
      %1508 = vmatpush1.msra.mxu0 0.0
      %1509 = vmatprep.subr.mxu0 0.0
      %1510 = vmatpush1.msra.mxu0 0.0
      %1511 = vmatprep.subr.mxu0 0.0
      %1512 = vmatpush1.msra.mxu0 0.0
      %1513 = vmatprep.subr.mxu0 0.0
      %1514 = vmatpush1.msra.mxu0 0.0
      %1515 = vmatprep.subr.mxu0 0.0
      %1516 = vmatpush1.msra.mxu0 0.0
      %1517 = vmatprep.subr.mxu0 0.0
      %1518 = vmatpush1.msra.mxu0 0.0
      %1519 = vmatprep.subr.mxu0 0.0
      %1520 = vmatpush1.msra.mxu0 0.0
      %1521 = vmatprep.subr.mxu0 0.0
      %1522 = vmatpush1.msra.mxu0 0.0
      %1523 = vmatprep.subr.mxu0 0.0
      %1524 = vmatpush1.msra.mxu0 0.0
      %1525 = vmatprep.subr.mxu0 0.0
      %1526 = vmatpush1.msra.mxu0 0.0
      %1527 = vmatprep.subr.mxu0 0.0
      %1528 = vmatpush1.msra.mxu0 0.0
      %1529 = vmatprep.subr.mxu0 0.0
      %1530 = vmatpush1.msra.mxu0 0.0
      %1531 = vmatprep.subr.mxu0 0.0
      %1532 = vmatpush1.msra.mxu0 0.0
      %1533 = vmatprep.subr.mxu0 0.0
      %1534 = vmatpush1.msra.mxu0 0.0
      %1535 = vmatprep.subr.mxu0 0.0
      %1536 = vmatpush1.msra.mxu0 0.0
      %1537 = vmatprep.subr.mxu0 0.0
      %1538 = vmatpush1.msra.mxu0 0.0
      %1539 = vmatprep.subr.mxu0 0.0
      %1540 = vmatpush1.msra.mxu0 0.0
      %1541 = vmatprep.subr.mxu0 0.0
      %1542 = vmatpush1.msra.mxu0 0.0
      %1543 = vmatprep.subr.mxu0 0.0
      %1544 = vmatpush1.msra.mxu0 0.0
      %1545 = vmatprep.subr.mxu0 0.0
      %1546 = vmatpush1.msra.mxu0 0.0
      %1547 = vmatprep.subr.mxu0 0.0
      %1548 = vmatpush1.msra.mxu0 0.0
      %1549 = vmatprep.subr.mxu0 0.0
      %1550 = vmatpush1.msra.mxu0 0.0
      %1551 = vmatprep.mubr.f32.mxu0 0.0
      %1552 = vmatmul.mubr.f32.gmra.mrb[0].mxu0 %v1482
      %v1553 = vpop.f32.mrb[0].mxu0
      %v1554 = vadd.f32 0.0, %v1553
      %v1555 = vpop.f32.mrb[0].mxu0
      %1556 = vdwg.mxu0
      %v1557 = vadd.f32 %v1477, %v1554
      %v1558 = vld [vmem:[#allocation2 + $0xa] sm:$0xff]
      %s1559 = scalar_lea.vmem %s9, 12
      %v1560 = vld [vmem:[%s1559] sm:$0x3]
      %v1562 = vsel %vm532, %v1558, 0
      %v1565 = vsel %vm536, %v1560, 0
      %1567 = vmatprep.subr.mxu0 0.0
      %1568 = vmatpush1.msra.mxu0 %v1565
      %1569 = vmatprep.subr.mxu0 0.0
      %1570 = vmatpush1.msra.mxu0 0.0
      %1571 = vmatprep.subr.mxu0 0.0
      %1572 = vmatpush1.msra.mxu0 0.0
      %1573 = vmatprep.subr.mxu0 0.0
      %1574 = vmatpush1.msra.mxu0 0.0
      %1575 = vmatprep.subr.mxu0 0.0
      %1576 = vmatpush1.msra.mxu0 0.0
      %1577 = vmatprep.subr.mxu0 0.0
      %1578 = vmatpush1.msra.mxu0 0.0
      %1579 = vmatprep.subr.mxu0 0.0
      %1580 = vmatpush1.msra.mxu0 0.0
      %1581 = vmatprep.subr.mxu0 0.0
      %1582 = vmatpush1.msra.mxu0 0.0
      %1583 = vmatprep.subr.mxu0 0.0
      %1584 = vmatpush1.msra.mxu0 0.0
      %1585 = vmatprep.subr.mxu0 0.0
      %1586 = vmatpush1.msra.mxu0 0.0
      %1587 = vmatprep.subr.mxu0 0.0
      %1588 = vmatpush1.msra.mxu0 0.0
      %1589 = vmatprep.subr.mxu0 0.0
      %1590 = vmatpush1.msra.mxu0 0.0
      %1591 = vmatprep.subr.mxu0 0.0
      %1592 = vmatpush1.msra.mxu0 0.0
      %1593 = vmatprep.subr.mxu0 0.0
      %1594 = vmatpush1.msra.mxu0 0.0
      %1595 = vmatprep.subr.mxu0 0.0
      %1596 = vmatpush1.msra.mxu0 0.0
      %1597 = vmatprep.subr.mxu0 0.0
      %1598 = vmatpush1.msra.mxu0 0.0
      %1599 = vmatprep.subr.mxu0 0.0
      %1600 = vmatpush1.msra.mxu0 0.0
      %1601 = vmatprep.subr.mxu0 0.0
      %1602 = vmatpush1.msra.mxu0 0.0
      %1603 = vmatprep.subr.mxu0 0.0
      %1604 = vmatpush1.msra.mxu0 0.0
      %1605 = vmatprep.subr.mxu0 0.0
      %1606 = vmatpush1.msra.mxu0 0.0
      %1607 = vmatprep.subr.mxu0 0.0
      %1608 = vmatpush1.msra.mxu0 0.0
      %1609 = vmatprep.subr.mxu0 0.0
      %1610 = vmatpush1.msra.mxu0 0.0
      %1611 = vmatprep.subr.mxu0 0.0
      %1612 = vmatpush1.msra.mxu0 0.0
      %1613 = vmatprep.subr.mxu0 0.0
      %1614 = vmatpush1.msra.mxu0 0.0
      %1615 = vmatprep.subr.mxu0 0.0
      %1616 = vmatpush1.msra.mxu0 0.0
      %1617 = vmatprep.subr.mxu0 0.0
      %1618 = vmatpush1.msra.mxu0 0.0
      %1619 = vmatprep.subr.mxu0 0.0
      %1620 = vmatpush1.msra.mxu0 0.0
      %1621 = vmatprep.subr.mxu0 0.0
      %1622 = vmatpush1.msra.mxu0 0.0
      %1623 = vmatprep.subr.mxu0 0.0
      %1624 = vmatpush1.msra.mxu0 0.0
      %1625 = vmatprep.subr.mxu0 0.0
      %1626 = vmatpush1.msra.mxu0 0.0
      %1627 = vmatprep.subr.mxu0 0.0
      %1628 = vmatpush1.msra.mxu0 0.0
      %1629 = vmatprep.subr.mxu0 0.0
      %1630 = vmatpush1.msra.mxu0 0.0
      %1631 = vmatprep.mubr.f32.mxu0 0.0
      %1632 = vmatmul.mubr.f32.gmra.mrb[0].mxu0 %v1562
      %v1633 = vpop.f32.mrb[0].mxu0
      %v1634 = vadd.f32 0.0, %v1633
      %v1635 = vpop.f32.mrb[0].mxu0
      %1636 = vdwg.mxu0
      %v1637 = vadd.f32 %v1557, %v1634
      %v1638 = vld [vmem:[#allocation2 + $0xb] sm:$0xff]
      %s1639 = scalar_lea.vmem %s9, 14
      %v1640 = vld [vmem:[%s1639] sm:$0x3]
      %v1642 = vsel %vm532, %v1638, 0
      %v1645 = vsel %vm536, %v1640, 0
      %1647 = vmatprep.subr.mxu0 0.0
      %1648 = vmatpush1.msra.mxu0 %v1645
      %1649 = vmatprep.subr.mxu0 0.0
      %1650 = vmatpush1.msra.mxu0 0.0
      %1651 = vmatprep.subr.mxu0 0.0
      %1652 = vmatpush1.msra.mxu0 0.0
      %1653 = vmatprep.subr.mxu0 0.0
      %1654 = vmatpush1.msra.mxu0 0.0
      %1655 = vmatprep.subr.mxu0 0.0
      %1656 = vmatpush1.msra.mxu0 0.0
      %1657 = vmatprep.subr.mxu0 0.0
      %1658 = vmatpush1.msra.mxu0 0.0
      %1659 = vmatprep.subr.mxu0 0.0
      %1660 = vmatpush1.msra.mxu0 0.0
      %1661 = vmatprep.subr.mxu0 0.0
      %1662 = vmatpush1.msra.mxu0 0.0
      %1663 = vmatprep.subr.mxu0 0.0
      %1664 = vmatpush1.msra.mxu0 0.0
      %1665 = vmatprep.subr.mxu0 0.0
      %1666 = vmatpush1.msra.mxu0 0.0
      %1667 = vmatprep.subr.mxu0 0.0
      %1668 = vmatpush1.msra.mxu0 0.0
      %1669 = vmatprep.subr.mxu0 0.0
      %1670 = vmatpush1.msra.mxu0 0.0
      %1671 = vmatprep.subr.mxu0 0.0
      %1672 = vmatpush1.msra.mxu0 0.0
      %1673 = vmatprep.subr.mxu0 0.0
      %1674 = vmatpush1.msra.mxu0 0.0
      %1675 = vmatprep.subr.mxu0 0.0
      %1676 = vmatpush1.msra.mxu0 0.0
      %1677 = vmatprep.subr.mxu0 0.0
      %1678 = vmatpush1.msra.mxu0 0.0
      %1679 = vmatprep.subr.mxu0 0.0
      %1680 = vmatpush1.msra.mxu0 0.0
      %1681 = vmatprep.subr.mxu0 0.0
      %1682 = vmatpush1.msra.mxu0 0.0
      %1683 = vmatprep.subr.mxu0 0.0
      %1684 = vmatpush1.msra.mxu0 0.0
      %1685 = vmatprep.subr.mxu0 0.0
      %1686 = vmatpush1.msra.mxu0 0.0
      %1687 = vmatprep.subr.mxu0 0.0
      %1688 = vmatpush1.msra.mxu0 0.0
      %1689 = vmatprep.subr.mxu0 0.0
      %1690 = vmatpush1.msra.mxu0 0.0
      %1691 = vmatprep.subr.mxu0 0.0
      %1692 = vmatpush1.msra.mxu0 0.0
      %1693 = vmatprep.subr.mxu0 0.0
      %1694 = vmatpush1.msra.mxu0 0.0
      %1695 = vmatprep.subr.mxu0 0.0
      %1696 = vmatpush1.msra.mxu0 0.0
      %1697 = vmatprep.subr.mxu0 0.0
      %1698 = vmatpush1.msra.mxu0 0.0
      %1699 = vmatprep.subr.mxu0 0.0
      %1700 = vmatpush1.msra.mxu0 0.0
      %1701 = vmatprep.subr.mxu0 0.0
      %1702 = vmatpush1.msra.mxu0 0.0
      %1703 = vmatprep.subr.mxu0 0.0
      %1704 = vmatpush1.msra.mxu0 0.0
      %1705 = vmatprep.subr.mxu0 0.0
      %1706 = vmatpush1.msra.mxu0 0.0
      %1707 = vmatprep.subr.mxu0 0.0
      %1708 = vmatpush1.msra.mxu0 0.0
      %1709 = vmatprep.subr.mxu0 0.0
      %1710 = vmatpush1.msra.mxu0 0.0
      %1711 = vmatprep.mubr.f32.mxu0 0.0
      %1712 = vmatmul.mubr.f32.gmra.mrb[0].mxu0 %v1642
      %v1713 = vpop.f32.mrb[0].mxu0
      %v1714 = vadd.f32 0.0, %v1713
      %v1715 = vpop.f32.mrb[0].mxu0
      %1716 = vdwg.mxu0
      %v1717 = vadd.f32 %v1637, %v1714
      %v1718 = vld [vmem:[#allocation2 + $0xc] sm:$0xff]
      %s1719 = scalar_lea.vmem %s9, 16
      %v1720 = vld [vmem:[%s1719] sm:$0x3]
      %v1722 = vsel %vm532, %v1718, 0
      %v1725 = vsel %vm536, %v1720, 0
      %1727 = vmatprep.subr.mxu0 0.0
      %1728 = vmatpush1.msra.mxu0 %v1725
      %1729 = vmatprep.subr.mxu0 0.0
      %1730 = vmatpush1.msra.mxu0 0.0
      %1731 = vmatprep.subr.mxu0 0.0
      %1732 = vmatpush1.msra.mxu0 0.0
      %1733 = vmatprep.subr.mxu0 0.0
      %1734 = vmatpush1.msra.mxu0 0.0
      %1735 = vmatprep.subr.mxu0 0.0
      %1736 = vmatpush1.msra.mxu0 0.0
      %1737 = vmatprep.subr.mxu0 0.0
      %1738 = vmatpush1.msra.mxu0 0.0
      %1739 = vmatprep.subr.mxu0 0.0
      %1740 = vmatpush1.msra.mxu0 0.0
      %1741 = vmatprep.subr.mxu0 0.0
      %1742 = vmatpush1.msra.mxu0 0.0
      %1743 = vmatprep.subr.mxu0 0.0
      %1744 = vmatpush1.msra.mxu0 0.0
      %1745 = vmatprep.subr.mxu0 0.0
      %1746 = vmatpush1.msra.mxu0 0.0
      %1747 = vmatprep.subr.mxu0 0.0
      %1748 = vmatpush1.msra.mxu0 0.0
      %1749 = vmatprep.subr.mxu0 0.0
      %1750 = vmatpush1.msra.mxu0 0.0
      %1751 = vmatprep.subr.mxu0 0.0
      %1752 = vmatpush1.msra.mxu0 0.0
      %1753 = vmatprep.subr.mxu0 0.0
      %1754 = vmatpush1.msra.mxu0 0.0
      %1755 = vmatprep.subr.mxu0 0.0
      %1756 = vmatpush1.msra.mxu0 0.0
      %1757 = vmatprep.subr.mxu0 0.0
      %1758 = vmatpush1.msra.mxu0 0.0
      %1759 = vmatprep.subr.mxu0 0.0
      %1760 = vmatpush1.msra.mxu0 0.0
      %1761 = vmatprep.subr.mxu0 0.0
      %1762 = vmatpush1.msra.mxu0 0.0
      %1763 = vmatprep.subr.mxu0 0.0
      %1764 = vmatpush1.msra.mxu0 0.0
      %1765 = vmatprep.subr.mxu0 0.0
      %1766 = vmatpush1.msra.mxu0 0.0
      %1767 = vmatprep.subr.mxu0 0.0
      %1768 = vmatpush1.msra.mxu0 0.0
      %1769 = vmatprep.subr.mxu0 0.0
      %1770 = vmatpush1.msra.mxu0 0.0
      %1771 = vmatprep.subr.mxu0 0.0
      %1772 = vmatpush1.msra.mxu0 0.0
      %1773 = vmatprep.subr.mxu0 0.0
      %1774 = vmatpush1.msra.mxu0 0.0
      %1775 = vmatprep.subr.mxu0 0.0
      %1776 = vmatpush1.msra.mxu0 0.0
      %1777 = vmatprep.subr.mxu0 0.0
      %1778 = vmatpush1.msra.mxu0 0.0
      %1779 = vmatprep.subr.mxu0 0.0
      %1780 = vmatpush1.msra.mxu0 0.0
      %1781 = vmatprep.subr.mxu0 0.0
      %1782 = vmatpush1.msra.mxu0 0.0
      %1783 = vmatprep.subr.mxu0 0.0
      %1784 = vmatpush1.msra.mxu0 0.0
      %1785 = vmatprep.subr.mxu0 0.0
      %1786 = vmatpush1.msra.mxu0 0.0
      %1787 = vmatprep.subr.mxu0 0.0
      %1788 = vmatpush1.msra.mxu0 0.0
      %1789 = vmatprep.subr.mxu0 0.0
      %1790 = vmatpush1.msra.mxu0 0.0
      %1791 = vmatprep.mubr.f32.mxu0 0.0
      %1792 = vmatmul.mubr.f32.gmra.mrb[0].mxu0 %v1722
      %v1793 = vpop.f32.mrb[0].mxu0
      %v1794 = vadd.f32 0.0, %v1793
      %v1795 = vpop.f32.mrb[0].mxu0
      %1796 = vdwg.mxu0
      %v1797 = vadd.f32 %v1717, %v1794
      %v1798 = vmax.f32 %v1797, 0.0
      %v1799 = vld [vmem:[%s11] sm:$0xff]
      %v1800 = vld [vmem:[%s11 + $0x8] sm:$0xff]
      %v1801 = vld [vmem:[%s12] sm:$0x1]
      %v1803 = vlaneseq
      %v1804 = vshrl.u32 %v1803, 7
      %v1805 = vsub.s32 0, %v1804
      %v1806 = vrot.slane %v1801, %v1805
      %vm1808 = vcmask 130048
      %v1810 = vsel %vm1808, %v1798, 0
      %1812 = vmatprep.subr.mxu0 0.0
      %1813 = vmatpush1.msra.mxu0 %v1799
      %1814 = vmatprep.subr.mxu0 0.0
      %1815 = vmatpush1.msra.mxu0 %v1800
      %1816 = vmatprep.subr.mxu0 0.0
      %1817 = vmatpush1.msra.mxu0 0.0
      %1818 = vmatprep.subr.mxu0 0.0
      %1819 = vmatpush1.msra.mxu0 0.0
      %1820 = vmatprep.subr.mxu0 0.0
      %1821 = vmatpush1.msra.mxu0 0.0
      %1822 = vmatprep.subr.mxu0 0.0
      %1823 = vmatpush1.msra.mxu0 0.0
      %1824 = vmatprep.subr.mxu0 0.0
      %1825 = vmatpush1.msra.mxu0 0.0
      %1826 = vmatprep.subr.mxu0 0.0
      %1827 = vmatpush1.msra.mxu0 0.0
      %1828 = vmatprep.subr.mxu0 0.0
      %1829 = vmatpush1.msra.mxu0 0.0
      %1830 = vmatprep.subr.mxu0 0.0
      %1831 = vmatpush1.msra.mxu0 0.0
      %1832 = vmatprep.subr.mxu0 0.0
      %1833 = vmatpush1.msra.mxu0 0.0
      %1834 = vmatprep.subr.mxu0 0.0
      %1835 = vmatpush1.msra.mxu0 0.0
      %1836 = vmatprep.subr.mxu0 0.0
      %1837 = vmatpush1.msra.mxu0 0.0
      %1838 = vmatprep.subr.mxu0 0.0
      %1839 = vmatpush1.msra.mxu0 0.0
      %1840 = vmatprep.subr.mxu0 0.0
      %1841 = vmatpush1.msra.mxu0 0.0
      %1842 = vmatprep.subr.mxu0 0.0
      %1843 = vmatpush1.msra.mxu0 0.0
      %1844 = vmatprep.subr.mxu0 0.0
      %1845 = vmatpush1.msra.mxu0 0.0
      %1846 = vmatprep.subr.mxu0 0.0
      %1847 = vmatpush1.msra.mxu0 0.0
      %1848 = vmatprep.subr.mxu0 0.0
      %1849 = vmatpush1.msra.mxu0 0.0
      %1850 = vmatprep.subr.mxu0 0.0
      %1851 = vmatpush1.msra.mxu0 0.0
      %1852 = vmatprep.subr.mxu0 0.0
      %1853 = vmatpush1.msra.mxu0 0.0
      %1854 = vmatprep.subr.mxu0 0.0
      %1855 = vmatpush1.msra.mxu0 0.0
      %1856 = vmatprep.subr.mxu0 0.0
      %1857 = vmatpush1.msra.mxu0 0.0
      %1858 = vmatprep.subr.mxu0 0.0
      %1859 = vmatpush1.msra.mxu0 0.0
      %1860 = vmatprep.subr.mxu0 0.0
      %1861 = vmatpush1.msra.mxu0 0.0
      %1862 = vmatprep.subr.mxu0 0.0
      %1863 = vmatpush1.msra.mxu0 0.0
      %1864 = vmatprep.subr.mxu0 0.0
      %1865 = vmatpush1.msra.mxu0 0.0
      %1866 = vmatprep.subr.mxu0 0.0
      %1867 = vmatpush1.msra.mxu0 0.0
      %1868 = vmatprep.subr.mxu0 0.0
      %1869 = vmatpush1.msra.mxu0 0.0
      %1870 = vmatprep.subr.mxu0 0.0
      %1871 = vmatpush1.msra.mxu0 0.0
      %1872 = vmatprep.subr.mxu0 0.0
      %1873 = vmatpush1.msra.mxu0 0.0
      %1874 = vmatprep.subr.mxu0 0.0
      %1875 = vmatpush1.msra.mxu0 0.0
      %1876 = vmatprep.mubr.f32.mxu0 0.0
      %1877 = vmatmul.mubr.f32.gmra.mrb[0].mxu0 %v1810
      %v1878 = vpop.f32.mrb[0].mxu0
      %v1879 = vadd.f32 %v1806, %v1878
      %v1880 = vpop.f32.mrb[0].mxu0
      %1881 = vdwg.mxu0
      %v1882 = vadd.f32 %v1879, %v1065
      %v1883 = vld [vmem:[%s13] sm:$0x1]
      %v1884 = vld [vmem:[%s14] sm:$0x1]
      %v1885 = vsel %vm532, %v1882, 0.0
      %1886 = vadd.xlane.f32.xlu0 %v1885
      %v1887 = vpop.xlane.xlu0 %1886
      %v1888 = vmul.f32 %v1887, %v1035
      %v1889 = vsub.f32 %v1882, %v1888
      %v1890 = vmul.f32 %v1889, %v1889
      %v1891 = vsel %vm532, %v1890, 0.0
      %1892 = vadd.xlane.f32.xlu0 %v1891
      %v1893 = vpop.xlane.xlu0 %1892
      %v1894 = vmul.f32 %v1893, %v1035
      %v1895 = vadd.f32 %v1894, 1e-05
      %v1896 = vrsqrt.pop %v1895
      %v1897 = vmul.f32 %v1889, %v1896
      %v1899 = vlaneseq
      %v1900 = vshrl.u32 %v1899, 7
      %v1901 = vsub.s32 0, %v1900
      %v1902 = vrot.slane %v1883, %v1901
      %v1904 = vmul.f32 %v1897, %v1902
      %v1906 = vlaneseq
      %v1907 = vshrl.u32 %v1906, 7
      %v1908 = vsub.s32 0, %v1907
      %v1909 = vrot.slane %v1884, %v1908
      %v1911 = vadd.f32 %v1904, %v1909
      %v1912 = vmul.f32 %v1911, %v1063
      %1913 = vst.msk [vmem:[%s520] sm:$0xff] %vm532, %v1912
      %p1914 = scmp.lt.s32.totalorder %s26, 1
      %s1915 = scalar_select %p1914, %s26, 1
      %s1916 = smul.addr %s1915, 8
      %s1917 = scalar_lea.vmem %s15, %s1916
      // Predicated region
      $region81: #{tpu_custom_call.1} parent=79 // pred_check
        %p1918 = pneg %p374
      $region82: #{tpu_custom_call.1} parent=79 // pred_check_branch
        %1920 = sbr.rel (%p1918) target = $region84
      $region83: #{tpu_custom_call.1} parent=79 // pred_region
        _
      $region84: #{tpu_custom_call.1} parent=79 // pred_fallthru
        _
    $region80: #{tpu_custom_call.1} parent=5 // pred_fallthru
      _
    %p1921 = scmp.le.s32.totalorder 2, %s21
    // Predicated region
    $region85: #{tpu_custom_call.1} parent=5 // pred_check
      %p1922 = pneg %p1921
    $region86: #{tpu_custom_call.1} parent=5 // pred_check_branch
      %1924 = sbr.rel (%p1922) target = $region88
    $region87: #{tpu_custom_call.1} parent=5 // pred_region
      %s1925 = ssub.s32 %s21, 2
      // Predicated region
      $region89: #{tpu_custom_call.1} parent=87 // pred_check
        %p1926 = pneg %p380
      $region90: #{tpu_custom_call.1} parent=87 // pred_check_branch
        %1928 = sbr.rel (%p1926) target = $region92
      $region91: #{tpu_custom_call.1} parent=87 // pred_region
        %p1929 = scmp.lt.s32.totalorder %s27, 1
        %s1930 = scalar_select %p1929, %s27, 1
        %s1931 = smul.addr %s1930, 8
        %s1932 = scalar_lea.vmem %s15, %s1931
      $region92: #{tpu_custom_call.1} parent=87 // pred_fallthru
        _
    $region88: #{tpu_custom_call.1} parent=5 // pred_fallthru
      _
  $region6: #{tpu_custom_call.1} parent=0 // loop_footer
    %s25 = sadd.s32 1, %s21
  $region7: #{tpu_custom_call.1} parent=0 // loop_footer_branch
    %20 = sbr.rel target = $region3
  $region8: #{tpu_custom_call.1} parent=0 // loop_exit
    _

</llo_original>
